<compile_context>
chip_gen: v6e
topology: v6e:2x2x1
jax: 0.10.0
libtpu: 0.0.40
codegen_flags: <defaults>
</compile_context>

<pallas_src>
import functools

import jax
import jax.numpy as jnp
from jax.experimental import pallas as pl
from jax.experimental.pallas import tpu as pltpu


_LEAKY_SLOPE = 0.01                    # nn.LeakyReLU() default
_VMEM_LIMIT = 48 * 1024 * 1024         # bytes; per-step usage stays well below this
_TARGET_ROWS = 4096                    # target M-rows (output positions) per grid step


# ----------------------------------------------------------------------------
# Block sizing: big lane/sublane-dense blocks, >=2 grid steps when possible
# (v7x has 2 TensorCores), `align` respects block-shape sublane constraints.
# ----------------------------------------------------------------------------
def _pick_tb(n, rows_per_image, target_rows, align=1):
    tb = max(1, min(n, target_rows // max(rows_per_image, 1)))
    if n >= 2 * max(align, 1):
        tb = min(tb, n // 2)           # keep the "parallel" grid shardable across 2 TCs
    if tb < n and align > 1:
        tb = max(align, (tb // align) * align)
        tb = min(tb, n)
    return tb


# ----------------------------------------------------------------------------
# Plain-JAX prep (cheap, single fused XLA pass over bf16 activations)
# ----------------------------------------------------------------------------
def _fold2x2(x_nhwc):
    """(N,H,W,C) -> (N, H/2+1, W/2+1, 4C) with
    F[n,p,q, dr*2C + dc*C + c] = xpad[n, 2p+dr, 2q+dc, c] (1-px zero border)."""
    n, h, w, c = x_nhwc.shape
    xp = jnp.pad(x_nhwc, ((0, 0), (1, 1), (1, 1), (0, 0)))
    hp, wp = h + 2, w + 2
    f = xp.reshape(n, hp // 2, 2, wp // 2, 2, c)
    f = jnp.transpose(f, (0, 1, 3, 2, 4, 5))
    return f.reshape(n, hp // 2, wp // 2, 4 * c)


def _im2col(x_nhwc, k=3, stride=2, pad=1):
    """(N,H,W,C) -> (N*Ho*Wo, k*k*C), patch channel order (ky,kx,c)."""
    n, h, w, c = x_nhwc.shape
    xp = jnp.pad(x_nhwc, ((0, 0), (pad, pad), (pad, pad), (0, 0)))
    ho = (h + 2 * pad - k) // stride + 1
    wo = (w + 2 * pad - k) // stride + 1
    cols = [xp[:, ky:ky + stride * ho:stride, kx:kx + stride * wo:stride, :]
            for ky in range(k) for kx in range(k)]
    patches = jnp.concatenate(cols, axis=-1)          # (n, ho, wo, 9c)
    return patches.reshape(n * ho * wo, k * k * c), ho, wo


# (phase, sub-row/col) -> 3x3 kernel tap index; (1,1) is unused (zero weights).
_OFFSET_TO_TAP = {(0, 0): 0, (0, 1): 1, (1, 0): 2}


def _fold_conv_weight(w_oihw):
    """(O,C,3,3) -> (4, 4C, O): one (4C,O) weight matrix per unit offset of the fold."""
    o, c, _, _ = w_oihw.shape
    wk = jnp.transpose(w_oihw, (2, 3, 1, 0))            # (ky, kx, C, O)
    wf = jnp.zeros((2, 2, 2, 2, c, o), w_oihw.dtype)    # (pi, pj, dr, dc, C, O)
    for (pi, dr), ky in _OFFSET_TO_TAP.items():
        for (pj, dc), kx in _OFFSET_TO_TAP.items():
            wf = wf.at[pi, pj, dr, dc].set(wk[ky, kx])
    return wf.reshape(4, 4 * c, o)                      # offset index = 2*pi + pj


# ----------------------------------------------------------------------------
# conv1: im2col matmul (K=27) + bias + LeakyReLU, bf16 out
# ----------------------------------------------------------------------------
def _matmul_bias_leaky_kernel(x_ref, w_ref, b_ref, o_ref, *, slope):
    acc = jnp.dot(x_ref[...], w_ref[...], preferred_element_type=jnp.float32)
    y = acc + b_ref[...]
    o_ref[...] = jnp.where(y > 0, y, slope * y).astype(o_ref.dtype)


def conv1_im2col_leaky(x_nhwc, w_oihw, b, *, slope=_LEAKY_SLOPE,
                       target_rows=_TARGET_ROWS):
    n, h, w, c = x_nhwc.shape
    cout = w_oihw.shape[0]
    patches, ho, wo = _im2col(x_nhwc.astype(jnp.bfloat16))     # (n*256, 27) bf16
    wmat = jnp.transpose(w_oihw, (2, 3, 1, 0)).reshape(9 * c, cout).astype(jnp.bfloat16)
    b2 = b.reshape(1, cout).astype(jnp.float32)

    spatial = ho * wo
    tb = _pick_tb(n, spatial, target_rows)
    m_blk = tb * spatial
    grid = (pl.cdiv(n, tb),)
    out = pl.pallas_call(
        functools.partial(_matmul_bias_leaky_kernel, slope=slope),
        out_shape=jax.ShapeDtypeStruct((n * spatial, cout), jnp.bfloat16),
        grid=grid,
        in_specs=[
            pl.BlockSpec((m_blk, 9 * c), lambda i: (i, 0)),
            pl.BlockSpec((9 * c, cout), lambda i: (0, 0)),     # resident weight
            pl.BlockSpec((1, cout), lambda i: (0, 0)),         # resident bias
        ],
        out_specs=pl.BlockSpec((m_blk, cout), lambda i: (i, 0)),
        compiler_params=pltpu.CompilerParams(
            dimension_semantics=("parallel",),
            vmem_limit_bytes=_VMEM_LIMIT),
    )(patches, wmat, b2)
    return out.reshape(n, ho, wo, cout)                        # bf16 NHWC


# ----------------------------------------------------------------------------
# conv2: fold-conv (4 accumulated MXU matmuls) + bias + LeakyReLU, bf16 out
# ----------------------------------------------------------------------------
def _fold_conv_kernel(f_ref, w_ref, b_ref, o_ref, *, ho, wo, slope):
    tb = f_ref.shape[0]
    c4 = f_ref.shape[3]
    cout = w_ref.shape[2]
    acc = jnp.zeros((tb * ho * wo, cout), jnp.float32)
    for pi in range(2):
        for pj in range(2):
            # TODO(synk): slice+reshape is not a view (wo < stored folded width),
            # costing ~1 VMEM relayout per tap; kept because padding the HBM
            # layout to a full sublane tile would cost more HBM traffic.
            tap = f_ref[:, pi:pi + ho, pj:pj + wo, :]          # (tb, ho, wo, 4C) bf16
            x2d = tap.reshape(tb * ho * wo, c4)
            acc = acc + jnp.dot(x2d, w_ref[2 * pi + pj],
                                preferred_element_type=jnp.float32)
    y = acc + b_ref[...]
    o_ref[...] = jnp.where(y > 0, y, slope * y).astype(o_ref.dtype)


def fold_conv3x3_s2_leaky(f, w_oihw, b, *, slope=_LEAKY_SLOPE,
                          target_rows=_TARGET_ROWS):
    """3x3 stride-2 pad-1 conv + LeakyReLU on a pre-folded bf16 input (n,hf,wf,4C)."""
    n, hf, wf, c4 = f.shape
    ho, wo = hf - 1, wf - 1
    cout = w_oihw.shape[0]
    wfold = _fold_conv_weight(w_oihw).astype(jnp.bfloat16)     # (4, 4C, cout)
    b2 = b.reshape(1, cout).astype(jnp.float32)

    spatial = ho * wo
    tb = _pick_tb(n, spatial, target_rows)
    grid = (pl.cdiv(n, tb),)
    out = pl.pallas_call(
        functools.partial(_fold_conv_kernel, ho=ho, wo=wo, slope=slope),
        out_shape=jax.ShapeDtypeStruct((n * spatial, cout), jnp.bfloat16),
        grid=grid,
        in_specs=[
            pl.BlockSpec((tb, hf, wf, c4), lambda i: (i, 0, 0, 0)),
            pl.BlockSpec((4, c4, cout), lambda i: (0, 0, 0)),  # resident weights
            pl.BlockSpec((1, cout), lambda i: (0, 0)),         # resident bias
        ],
        out_specs=pl.BlockSpec((tb * spatial, cout), lambda i: (i, 0)),
        compiler_params=pltpu.CompilerParams(
            dimension_semantics=("parallel",),
            vmem_limit_bytes=_VMEM_LIMIT),
    )(f, wfold, b2)
    return out.reshape(n, ho, wo, cout)                        # bf16 NHWC


# ----------------------------------------------------------------------------
# conv3 + final Linear: fold-conv + bias + LeakyReLU + weighted reduction
# ----------------------------------------------------------------------------
def _fold_conv_linear_kernel(f_ref, w_ref, b_ref, lw_ref, o_ref, *, ho, wo, slope):
    tb = f_ref.shape[0]
    c4 = f_ref.shape[3]
    cout = w_ref.shape[2]
    spatial = ho * wo
    acc = jnp.zeros((tb * spatial, cout), jnp.float32)
    for pi in range(2):
        for pj in range(2):
            tap = f_ref[:, pi:pi + ho, pj:pj + wo, :]
            x2d = tap.reshape(tb * spatial, c4)
            acc = acc + jnp.dot(x2d, w_ref[2 * pi + pj],
                                preferred_element_type=jnp.float32)
    y = acc + b_ref[...]
    y = jnp.where(y > 0, y, slope * y)                         # (tb*16, 4D) f32
    # Final Linear(4*4*4D -> 1) as a VPU weighted reduction: no N=1 MXU pass, no
    # NHWC->NCHW transpose (flatten permutation folded into lw on the host), and
    # the full per-image reduction happens in-kernel -> output block is (tb, 1).
    y = y.reshape(tb, spatial, cout)
    part = jnp.sum(y * lw_ref[...][None, :, :], axis=-1)       # (tb, spatial)
    o_ref[...] = jnp.sum(part, axis=-1, keepdims=True)         # (tb, 1) f32


def fold_conv3x3_s2_leaky_linear(f, w_oihw, b, lin_w, *, slope=_LEAKY_SLOPE,
                                 target_rows=_TARGET_ROWS):
    n, hf, wf, c4 = f.shape
    ho, wo = hf - 1, wf - 1
    spatial = ho * wo
    cout = w_oihw.shape[0]                                     # 4*DIM
    wfold = _fold_conv_weight(w_oihw).astype(jnp.bfloat16)     # (4, 8D, 4D)
    b2 = b.reshape(1, cout).astype(jnp.float32)
    # torch flattens NCHW: feature index = ch*16 + (h*4+w).  Our in-kernel rows are
    # s = h*4+w (per image) with channels on lanes, so the per-position linear weight
    # is lin_w.reshape(cout, 16).T of shape (16, cout).
    lmat = lin_w.reshape(cout, spatial).T.astype(jnp.float32)

    tb = _pick_tb(n, spatial, target_rows, align=8)            # (tb,1) out block needs 8-align
    grid = (pl.cdiv(n, tb),)
    out = pl.pallas_call(
        functools.partial(_fold_conv_linear_kernel, ho=ho, wo=wo, slope=slope),
        out_shape=jax.ShapeDtypeStruct((n, 1), jnp.float32),
        grid=grid,
        in_specs=[
            pl.BlockSpec((tb, hf, wf, c4), lambda i: (i, 0, 0, 0)),
            pl.BlockSpec((4, c4, cout), lambda i: (0, 0, 0)),  # resident conv3 weight
            pl.BlockSpec((1, cout), lambda i: (0, 0)),         # resident conv3 bias
            pl.BlockSpec((spatial, cout), lambda i: (0, 0)),   # resident linear weight
        ],
        out_specs=pl.BlockSpec((tb, 1), lambda i: (i, 0)),
        compiler_params=pltpu.CompilerParams(
            dimension_semantics=("parallel",),
            vmem_limit_bytes=_VMEM_LIMIT),
    )(f, wfold, b2, lmat)
    return out                                                 # (n, 1) f32


# ----------------------------------------------------------------------------
# Full forward pass
# ----------------------------------------------------------------------------
def discriminator_wgan_forward(x_nchw, params):
    x = jnp.transpose(x_nchw, (0, 2, 3, 1))                              # NCHW -> NHWC
    y1 = conv1_im2col_leaky(x, params["conv1_w"], params["conv1_b"])     # (N,16,16,  D) bf16
    f2 = _fold2x2(y1)                                                    # (N, 9, 9, 4D) bf16
    y2 = fold_conv3x3_s2_leaky(f2, params["conv2_w"], params["conv2_b"]) # (N, 8, 8, 2D) bf16
    f3 = _fold2x2(y2)                                                    # (N, 5, 5, 8D) bf16
    out = fold_conv3x3_s2_leaky_linear(f3, params["conv3_w"],
                                       params["conv3_b"], params["lin_w"])
    return out + params["lin_b"]                                         # (N, 1) f32


def init_params(key, dim):
    ks = jax.random.split(key, 8)
    def u(k, shape, fan_in):
        bound = 1.0 / jnp.sqrt(fan_in)
        return jax.random.uniform(k, shape, jnp.float32, -bound, bound)
    return {
        "conv1_w": u(ks[0], (dim, 3, 3, 3), 3 * 9),
        "conv1_b": u(ks[1], (dim,), 3 * 9),
        "conv2_w": u(ks[2], (2 * dim, dim, 3, 3), dim * 9),
        "conv2_b": u(ks[3], (2 * dim,), dim * 9),
        "conv3_w": u(ks[4], (4 * dim, 2 * dim, 3, 3), 2 * dim * 9),
        "conv3_b": u(ks[5], (4 * dim,), 2 * dim * 9),
        "lin_w":   u(ks[6], (1, 4 * 4 * 4 * dim), 4 * 4 * 4 * dim),
        "lin_b":   u(ks[7], (1,), 4 * 4 * 4 * dim),
    }


if __name__ == "__main__":
    DIM = 8          # small DIM for a quick test (PyTorch default is 64)
    BATCH = 2
    key = jax.random.PRNGKey(0)
    k_x, k_p = jax.random.split(key)
    # Spatial size must be 32 so that three stride-2 convs give 4x4 features.
    x = jax.random.normal(k_x, (BATCH, 3, 32, 32), dtype=jnp.float32)
    params = init_params(k_p, DIM)

    fwd = jax.jit(discriminator_wgan_forward)
    out = jax.block_until_ready(fwd(x, params))
    assert out.shape == (BATCH, 1), out.shape
    assert bool(jnp.all(jnp.isfinite(out))), "non-finite output"
    print("KERNEL_OK")
</pallas_src>

<mosaic_0001>
module attributes {stable_mosaic.version = 11 : i64} {
  func.func @_matmul_bias_leaky_kernel(%arg0: i32, %arg1: memref<256x27xbf16, #tpu.memory_space<vmem>>, %arg2: memref<27x8xbf16, #tpu.memory_space<vmem>>, %arg3: memref<1x8xf32, #tpu.memory_space<vmem>>, %arg4: memref<256x8xbf16, #tpu.memory_space<vmem>>) attributes {dimension_semantics = [#tpu.dimension_semantics<parallel>], iteration_bounds = array<i64: 2>, scalar_prefetch = 0 : i64, scratch_operands = 0 : i64, tpu.core_type = #tpu.core_type<tc>, window_params = [{transform_indices = @transform_0, window_bounds = array<i64: 256, 27>}, {pipeline_mode = #tpu.pipeline_mode<synchronous>, transform_indices = @transform_1, window_bounds = array<i64: 27, 8>}, {pipeline_mode = #tpu.pipeline_mode<synchronous>, transform_indices = @transform_2, window_bounds = array<i64: 1, 8>}, {transform_indices = @transform_3, window_bounds = array<i64: 256, 8>}]} {
    %c0 = arith.constant 0 : index
    %c0_0 = arith.constant 0 : index
    %0 = vector.load %arg1[%c0, %c0_0] : memref<256x27xbf16, #tpu.memory_space<vmem>>, vector<256x27xbf16>
    %c0_1 = arith.constant 0 : index
    %c0_2 = arith.constant 0 : index
    %1 = vector.load %arg2[%c0_1, %c0_2] : memref<27x8xbf16, #tpu.memory_space<vmem>>, vector<27x8xbf16>
    %cst = arith.constant dense<0.000000e+00> : vector<256x8xf32>
    %2 = tpu.matmul %0, %1, %cst {dimension_numbers = #tpu.dot_dimension_numbers<[1], [0], [0], [1], [0, 0, 1, 1], [], []>} : vector<256x27xbf16>, vector<27x8xbf16>, vector<256x8xf32> -> vector<256x8xf32>
    %c0_3 = arith.constant 0 : index
    %c0_4 = arith.constant 0 : index
    %3 = vector.load %arg3[%c0_3, %c0_4] : memref<1x8xf32, #tpu.memory_space<vmem>>, vector<1x8xf32>
    %4 = vector.broadcast %3 : vector<1x8xf32> to vector<256x8xf32>
    %5 = arith.addf %2, %4 : vector<256x8xf32>
    %cst_5 = arith.constant 0.000000e+00 : f32
    %6 = vector.broadcast %cst_5 : f32 to vector<256x8xf32>
    %7 = arith.cmpf ogt, %5, %6 : vector<256x8xf32>
    %cst_6 = arith.constant 0.00999999977 : f32
    %8 = vector.broadcast %cst_6 : f32 to vector<256x8xf32>
    %9 = arith.mulf %8, %5 : vector<256x8xf32>
    %10 = arith.select %7, %5, %9 : vector<256x8xi1>, vector<256x8xf32>
    %11 = arith.truncf %10 : vector<256x8xf32> to vector<256x8xbf16>
    %c0_7 = arith.constant 0 : index
    %c0_8 = arith.constant 0 : index
    %12 = vector.load %arg4[%c0_7, %c0_8] : memref<256x8xbf16, #tpu.memory_space<vmem>>, vector<256x8xbf16>
    tpu.vector_store %arg4[%c0_7, %c0_8], %11 {strides = array<i32>} : memref<256x8xbf16, #tpu.memory_space<vmem>>, vector<256x8xbf16>,
    return
  }
  func.func @transform_0(%arg0: i32) -> (i32, i32) {
    %c0_i32 = arith.constant 0 : i32
    %c0_i32_0 = arith.constant 0 : i32
    return %arg0, %c0_i32 : i32, i32
  }
  func.func @transform_1(%arg0: i32) -> (i32, i32) {
    %c0_i32 = arith.constant 0 : i32
    %c0_i32_0 = arith.constant 0 : i32
    %c0_i32_1 = arith.constant 0 : i32
    return %c0_i32, %c0_i32_0 : i32, i32
  }
  func.func @transform_2(%arg0: i32) -> (i32, i32) {
    %c0_i32 = arith.constant 0 : i32
    %c0_i32_0 = arith.constant 0 : i32
    %c0_i32_1 = arith.constant 0 : i32
    return %c0_i32, %c0_i32_0 : i32, i32
  }
  func.func @transform_3(%arg0: i32) -> (i32, i32) {
    %c0_i32 = arith.constant 0 : i32
    %c0_i32_0 = arith.constant 0 : i32
    return %arg0, %c0_i32 : i32, i32
  }
}

module attributes {stable_mosaic.version = 11 : i64} {
  func.func @_fold_conv_kernel(%arg0: i32, %arg1: memref<1x9x9x32xbf16, #tpu.memory_space<vmem>>, %arg2: memref<4x32x16xbf16, #tpu.memory_space<vmem>>, %arg3: memref<1x16xf32, #tpu.memory_space<vmem>>, %arg4: memref<64x16xbf16, #tpu.memory_space<vmem>>) attributes {dimension_semantics = [#tpu.dimension_semantics<parallel>], iteration_bounds = array<i64: 2>, scalar_prefetch = 0 : i64, scratch_operands = 0 : i64, tpu.core_type = #tpu.core_type<tc>, window_params = [{transform_indices = @transform_0, window_bounds = array<i64: 1, 9, 9, 32>}, {pipeline_mode = #tpu.pipeline_mode<synchronous>, transform_indices = @transform_1, window_bounds = array<i64: 4, 32, 16>}, {pipeline_mode = #tpu.pipeline_mode<synchronous>, transform_indices = @transform_2, window_bounds = array<i64: 1, 16>}, {transform_indices = @transform_3, window_bounds = array<i64: 64, 16>}]} {
    %cst = arith.constant 0.000000e+00 : f32
    %0 = vector.broadcast %cst : f32 to vector<64x16xf32>
    %c0 = arith.constant 0 : index
    %c0_0 = arith.constant 0 : index
    %c0_1 = arith.constant 0 : index
    %c0_2 = arith.constant 0 : index
    %1 = vector.load %arg1[%c0, %c0_0, %c0_1, %c0_2] : memref<1x9x9x32xbf16, #tpu.memory_space<vmem>>, vector<1x8x8x32xbf16>
    %2 = vector.shape_cast %1 : vector<1x8x8x32xbf16> to vector<64x32xbf16>
    %c0_3 = arith.constant 0 : index
    %c0_4 = arith.constant 0 : index
    %c0_5 = arith.constant 0 : index
    %3 = vector.load %arg2[%c0_3, %c0_4, %c0_5] : memref<4x32x16xbf16, #tpu.memory_space<vmem>>, vector<1x32x16xbf16>
    %4 = vector.shape_cast %3 : vector<1x32x16xbf16> to vector<32x16xbf16>
    %cst_6 = arith.constant dense<0.000000e+00> : vector<64x16xf32>
    %5 = tpu.matmul %2, %4, %cst_6 {dimension_numbers = #tpu.dot_dimension_numbers<[1], [0], [0], [1], [0, 0, 1, 1], [], []>} : vector<64x32xbf16>, vector<32x16xbf16>, vector<64x16xf32> -> vector<64x16xf32>
    %6 = arith.addf %0, %5 : vector<64x16xf32>
    %c0_7 = arith.constant 0 : index
    %c0_8 = arith.constant 0 : index
    %c1 = arith.constant 1 : index
    %c0_9 = arith.constant 0 : index
    %7 = vector.load %arg1[%c0_7, %c0_8, %c1, %c0_9] : memref<1x9x9x32xbf16, #tpu.memory_space<vmem>>, vector<1x8x8x32xbf16>
    %8 = vector.shape_cast %7 : vector<1x8x8x32xbf16> to vector<64x32xbf16>
    %c1_10 = arith.constant 1 : index
    %c0_11 = arith.constant 0 : index
    %c0_12 = arith.constant 0 : index
    %9 = vector.load %arg2[%c1_10, %c0_11, %c0_12] : memref<4x32x16xbf16, #tpu.memory_space<vmem>>, vector<1x32x16xbf16>
    %10 = vector.shape_cast %9 : vector<1x32x16xbf16> to vector<32x16xbf16>
    %cst_13 = arith.constant dense<0.000000e+00> : vector<64x16xf32>
    %11 = tpu.matmul %8, %10, %cst_13 {dimension_numbers = #tpu.dot_dimension_numbers<[1], [0], [0], [1], [0, 0, 1, 1], [], []>} : vector<64x32xbf16>, vector<32x16xbf16>, vector<64x16xf32> -> vector<64x16xf32>
    %12 = arith.addf %6, %11 : vector<64x16xf32>
    %c0_14 = arith.constant 0 : index
    %c1_15 = arith.constant 1 : index
    %c0_16 = arith.constant 0 : index
    %c0_17 = arith.constant 0 : index
    %13 = vector.load %arg1[%c0_14, %c1_15, %c0_16, %c0_17] : memref<1x9x9x32xbf16, #tpu.memory_space<vmem>>, vector<1x8x8x32xbf16>
    %14 = vector.shape_cast %13 : vector<1x8x8x32xbf16> to vector<64x32xbf16>
    %c2 = arith.constant 2 : index
    %c0_18 = arith.constant 0 : index
    %c0_19 = arith.constant 0 : index
    %15 = vector.load %arg2[%c2, %c0_18, %c0_19] : memref<4x32x16xbf16, #tpu.memory_space<vmem>>, vector<1x32x16xbf16>
    %16 = vector.shape_cast %15 : vector<1x32x16xbf16> to vector<32x16xbf16>
    %cst_20 = arith.constant dense<0.000000e+00> : vector<64x16xf32>
    %17 = tpu.matmul %14, %16, %cst_20 {dimension_numbers = #tpu.dot_dimension_numbers<[1], [0], [0], [1], [0, 0, 1, 1], [], []>} : vector<64x32xbf16>, vector<32x16xbf16>, vector<64x16xf32> -> vector<64x16xf32>
    %18 = arith.addf %12, %17 : vector<64x16xf32>
    %c0_21 = arith.constant 0 : index
    %c1_22 = arith.constant 1 : index
    %c1_23 = arith.constant 1 : index
    %c0_24 = arith.constant 0 : index
    %19 = vector.load %arg1[%c0_21, %c1_22, %c1_23, %c0_24] : memref<1x9x9x32xbf16, #tpu.memory_space<vmem>>, vector<1x8x8x32xbf16>
    %20 = vector.shape_cast %19 : vector<1x8x8x32xbf16> to vector<64x32xbf16>
    %c3 = arith.constant 3 : index
    %c0_25 = arith.constant 0 : index
    %c0_26 = arith.constant 0 : index
    %21 = vector.load %arg2[%c3, %c0_25, %c0_26] : memref<4x32x16xbf16, #tpu.memory_space<vmem>>, vector<1x32x16xbf16>
    %22 = vector.shape_cast %21 : vector<1x32x16xbf16> to vector<32x16xbf16>
    %cst_27 = arith.constant dense<0.000000e+00> : vector<64x16xf32>
    %23 = tpu.matmul %20, %22, %cst_27 {dimension_numbers = #tpu.dot_dimension_numbers<[1], [0], [0], [1], [0, 0, 1, 1], [], []>} : vector<64x32xbf16>, vector<32x16xbf16>, vector<64x16xf32> -> vector<64x16xf32>
    %24 = arith.addf %18, %23 : vector<64x16xf32>
    %c0_28 = arith.constant 0 : index
    %c0_29 = arith.constant 0 : index
    %25 = vector.load %arg3[%c0_28, %c0_29] : memref<1x16xf32, #tpu.memory_space<vmem>>, vector<1x16xf32>
    %26 = vector.broadcast %25 : vector<1x16xf32> to vector<64x16xf32>
    %27 = arith.addf %24, %26 : vector<64x16xf32>
    %cst_30 = arith.constant 0.000000e+00 : f32
    %28 = vector.broadcast %cst_30 : f32 to vector<64x16xf32>
    %29 = arith.cmpf ogt, %27, %28 : vector<64x16xf32>
    %cst_31 = arith.constant 0.00999999977 : f32
    %30 = vector.broadcast %cst_31 : f32 to vector<64x16xf32>
    %31 = arith.mulf %30, %27 : vector<64x16xf32>
    %32 = arith.select %29, %27, %31 : vector<64x16xi1>, vector<64x16xf32>
    %33 = arith.truncf %32 : vector<64x16xf32> to vector<64x16xbf16>
    %c0_32 = arith.constant 0 : index
    %c0_33 = arith.constant 0 : index
    %34 = vector.load %arg4[%c0_32, %c0_33] : memref<64x16xbf16, #tpu.memory_space<vmem>>, vector<64x16xbf16>
    tpu.vector_store %arg4[%c0_32, %c0_33], %33 {strides = array<i32>} : memref<64x16xbf16, #tpu.memory_space<vmem>>, vector<64x16xbf16>,
    return
  }
  func.func @transform_0(%arg0: i32) -> (i32, i32, i32, i32) {
    %c0_i32 = arith.constant 0 : i32
    %c0_i32_0 = arith.constant 0 : i32
    %c0_i32_1 = arith.constant 0 : i32
    %c0_i32_2 = arith.constant 0 : i32
    return %arg0, %c0_i32, %c0_i32_0, %c0_i32_1 : i32, i32, i32, i32
  }
  func.func @transform_1(%arg0: i32) -> (i32, i32, i32) {
    %c0_i32 = arith.constant 0 : i32
    %c0_i32_0 = arith.constant 0 : i32
    %c0_i32_1 = arith.constant 0 : i32
    %c0_i32_2 = arith.constant 0 : i32
    return %c0_i32, %c0_i32_0, %c0_i32_1 : i32, i32, i32
  }
  func.func @transform_2(%arg0: i32) -> (i32, i32) {
    %c0_i32 = arith.constant 0 : i32
    %c0_i32_0 = arith.constant 0 : i32
    %c0_i32_1 = arith.constant 0 : i32
    return %c0_i32, %c0_i32_0 : i32, i32
  }
  func.func @transform_3(%arg0: i32) -> (i32, i32) {
    %c0_i32 = arith.constant 0 : i32
    %c0_i32_0 = arith.constant 0 : i32
    return %arg0, %c0_i32 : i32, i32
  }
}

module attributes {stable_mosaic.version = 11 : i64} {
  func.func @_fold_conv_linear_kernel(%arg0: i32, %arg1: memref<2x5x5x64xbf16, #tpu.memory_space<vmem>>, %arg2: memref<4x64x32xbf16, #tpu.memory_space<vmem>>, %arg3: memref<1x32xf32, #tpu.memory_space<vmem>>, %arg4: memref<16x32xf32, #tpu.memory_space<vmem>>, %arg5: memref<2x1xf32, #tpu.memory_space<vmem>>) attributes {dimension_semantics = [#tpu.dimension_semantics<parallel>], iteration_bounds = array<i64: 1>, scalar_prefetch = 0 : i64, scratch_operands = 0 : i64, tpu.core_type = #tpu.core_type<tc>, window_params = [{transform_indices = @transform_0, window_bounds = array<i64: 2, 5, 5, 64>}, {pipeline_mode = #tpu.pipeline_mode<synchronous>, transform_indices = @transform_1, window_bounds = array<i64: 4, 64, 32>}, {pipeline_mode = #tpu.pipeline_mode<synchronous>, transform_indices = @transform_2, window_bounds = array<i64: 1, 32>}, {pipeline_mode = #tpu.pipeline_mode<synchronous>, transform_indices = @transform_3, window_bounds = array<i64: 16, 32>}, {transform_indices = @transform_4, window_bounds = array<i64: 2, 1>}]} {
    %cst = arith.constant 0.000000e+00 : f32
    %0 = vector.broadcast %cst : f32 to vector<32x32xf32>
    %c0 = arith.constant 0 : index
    %c0_0 = arith.constant 0 : index
    %c0_1 = arith.constant 0 : index
    %c0_2 = arith.constant 0 : index
    %1 = vector.load %arg1[%c0, %c0_0, %c0_1, %c0_2] : memref<2x5x5x64xbf16, #tpu.memory_space<vmem>>, vector<2x4x4x64xbf16>
    %2 = vector.shape_cast %1 : vector<2x4x4x64xbf16> to vector<32x64xbf16>
    %c0_3 = arith.constant 0 : index
    %c0_4 = arith.constant 0 : index
    %c0_5 = arith.constant 0 : index
    %3 = vector.load %arg2[%c0_3, %c0_4, %c0_5] : memref<4x64x32xbf16, #tpu.memory_space<vmem>>, vector<1x64x32xbf16>
    %4 = vector.shape_cast %3 : vector<1x64x32xbf16> to vector<64x32xbf16>
    %cst_6 = arith.constant dense<0.000000e+00> : vector<32x32xf32>
    %5 = tpu.matmul %2, %4, %cst_6 {dimension_numbers = #tpu.dot_dimension_numbers<[1], [0], [0], [1], [0, 0, 1, 1], [], []>} : vector<32x64xbf16>, vector<64x32xbf16>, vector<32x32xf32> -> vector<32x32xf32>
    %6 = arith.addf %0, %5 : vector<32x32xf32>
    %c0_7 = arith.constant 0 : index
    %c0_8 = arith.constant 0 : index
    %c1 = arith.constant 1 : index
    %c0_9 = arith.constant 0 : index
    %7 = vector.load %arg1[%c0_7, %c0_8, %c1, %c0_9] : memref<2x5x5x64xbf16, #tpu.memory_space<vmem>>, vector<2x4x4x64xbf16>
    %8 = vector.shape_cast %7 : vector<2x4x4x64xbf16> to vector<32x64xbf16>
    %c1_10 = arith.constant 1 : index
    %c0_11 = arith.constant 0 : index
    %c0_12 = arith.constant 0 : index
    %9 = vector.load %arg2[%c1_10, %c0_11, %c0_12] : memref<4x64x32xbf16, #tpu.memory_space<vmem>>, vector<1x64x32xbf16>
    %10 = vector.shape_cast %9 : vector<1x64x32xbf16> to vector<64x32xbf16>
    %cst_13 = arith.constant dense<0.000000e+00> : vector<32x32xf32>
    %11 = tpu.matmul %8, %10, %cst_13 {dimension_numbers = #tpu.dot_dimension_numbers<[1], [0], [0], [1], [0, 0, 1, 1], [], []>} : vector<32x64xbf16>, vector<64x32xbf16>, vector<32x32xf32> -> vector<32x32xf32>
    %12 = arith.addf %6, %11 : vector<32x32xf32>
    %c0_14 = arith.constant 0 : index
    %c1_15 = arith.constant 1 : index
    %c0_16 = arith.constant 0 : index
    %c0_17 = arith.constant 0 : index
    %13 = vector.load %arg1[%c0_14, %c1_15, %c0_16, %c0_17] : memref<2x5x5x64xbf16, #tpu.memory_space<vmem>>, vector<2x4x4x64xbf16>
    %14 = vector.shape_cast %13 : vector<2x4x4x64xbf16> to vector<32x64xbf16>
    %c2 = arith.constant 2 : index
    %c0_18 = arith.constant 0 : index
    %c0_19 = arith.constant 0 : index
    %15 = vector.load %arg2[%c2, %c0_18, %c0_19] : memref<4x64x32xbf16, #tpu.memory_space<vmem>>, vector<1x64x32xbf16>
    %16 = vector.shape_cast %15 : vector<1x64x32xbf16> to vector<64x32xbf16>
    %cst_20 = arith.constant dense<0.000000e+00> : vector<32x32xf32>
    %17 = tpu.matmul %14, %16, %cst_20 {dimension_numbers = #tpu.dot_dimension_numbers<[1], [0], [0], [1], [0, 0, 1, 1], [], []>} : vector<32x64xbf16>, vector<64x32xbf16>, vector<32x32xf32> -> vector<32x32xf32>
    %18 = arith.addf %12, %17 : vector<32x32xf32>
    %c0_21 = arith.constant 0 : index
    %c1_22 = arith.constant 1 : index
    %c1_23 = arith.constant 1 : index
    %c0_24 = arith.constant 0 : index
    %19 = vector.load %arg1[%c0_21, %c1_22, %c1_23, %c0_24] : memref<2x5x5x64xbf16, #tpu.memory_space<vmem>>, vector<2x4x4x64xbf16>
    %20 = vector.shape_cast %19 : vector<2x4x4x64xbf16> to vector<32x64xbf16>
    %c3 = arith.constant 3 : index
    %c0_25 = arith.constant 0 : index
    %c0_26 = arith.constant 0 : index
    %21 = vector.load %arg2[%c3, %c0_25, %c0_26] : memref<4x64x32xbf16, #tpu.memory_space<vmem>>, vector<1x64x32xbf16>
    %22 = vector.shape_cast %21 : vector<1x64x32xbf16> to vector<64x32xbf16>
    %cst_27 = arith.constant dense<0.000000e+00> : vector<32x32xf32>
    %23 = tpu.matmul %20, %22, %cst_27 {dimension_numbers = #tpu.dot_dimension_numbers<[1], [0], [0], [1], [0, 0, 1, 1], [], []>} : vector<32x64xbf16>, vector<64x32xbf16>, vector<32x32xf32> -> vector<32x32xf32>
    %24 = arith.addf %18, %23 : vector<32x32xf32>
    %c0_28 = arith.constant 0 : index
    %c0_29 = arith.constant 0 : index
    %25 = vector.load %arg3[%c0_28, %c0_29] : memref<1x32xf32, #tpu.memory_space<vmem>>, vector<1x32xf32>
    %26 = vector.broadcast %25 : vector<1x32xf32> to vector<32x32xf32>
    %27 = arith.addf %24, %26 : vector<32x32xf32>
    %cst_30 = arith.constant 0.000000e+00 : f32
    %28 = vector.broadcast %cst_30 : f32 to vector<32x32xf32>
    %29 = arith.cmpf ogt, %27, %28 : vector<32x32xf32>
    %cst_31 = arith.constant 0.00999999977 : f32
    %30 = vector.broadcast %cst_31 : f32 to vector<32x32xf32>
    %31 = arith.mulf %30, %27 : vector<32x32xf32>
    %32 = arith.select %29, %27, %31 : vector<32x32xi1>, vector<32x32xf32>
    %33 = vector.shape_cast %32 : vector<32x32xf32> to vector<2x16x32xf32>
    %c0_32 = arith.constant 0 : index
    %c0_33 = arith.constant 0 : index
    %34 = vector.load %arg4[%c0_32, %c0_33] : memref<16x32xf32, #tpu.memory_space<vmem>>, vector<16x32xf32>
    %35 = vector.shape_cast %34 : vector<16x32xf32> to vector<1x16x32xf32>
    %36 = vector.broadcast %35 : vector<1x16x32xf32> to vector<2x16x32xf32>
    %37 = arith.mulf %33, %36 : vector<2x16x32xf32>
    %cst_34 = arith.constant dense<0.000000e+00> : vector<2x16xf32>
    %38 = vector.multi_reduction <add>, %37, %cst_34 [2] : vector<2x16x32xf32> to vector<2x16xf32>
    %cst_35 = arith.constant dense<0.000000e+00> : vector<2xf32>
    %39 = vector.multi_reduction <add>, %38, %cst_35 [1] : vector<2x16xf32> to vector<2xf32>
    %40 = vector.shape_cast %39 : vector<2xf32> to vector<2x1xf32>
    %c0_36 = arith.constant 0 : index
    %c0_37 = arith.constant 0 : index
    %41 = vector.load %arg5[%c0_36, %c0_37] : memref<2x1xf32, #tpu.memory_space<vmem>>, vector<2x1xf32>
    tpu.vector_store %arg5[%c0_36, %c0_37], %40 {strides = array<i32>} : memref<2x1xf32, #tpu.memory_space<vmem>>, vector<2x1xf32>,
    return
  }
  func.func @transform_0(%arg0: i32) -> (i32, i32, i32, i32) {
    %c0_i32 = arith.constant 0 : i32
    %c0_i32_0 = arith.constant 0 : i32
    %c0_i32_1 = arith.constant 0 : i32
    %c0_i32_2 = arith.constant 0 : i32
    return %arg0, %c0_i32, %c0_i32_0, %c0_i32_1 : i32, i32, i32, i32
  }
  func.func @transform_1(%arg0: i32) -> (i32, i32, i32) {
    %c0_i32 = arith.constant 0 : i32
    %c0_i32_0 = arith.constant 0 : i32
    %c0_i32_1 = arith.constant 0 : i32
    %c0_i32_2 = arith.constant 0 : i32
    return %c0_i32, %c0_i32_0, %c0_i32_1 : i32, i32, i32
  }
  func.func @transform_2(%arg0: i32) -> (i32, i32) {
    %c0_i32 = arith.constant 0 : i32
    %c0_i32_0 = arith.constant 0 : i32
    %c0_i32_1 = arith.constant 0 : i32
    return %c0_i32, %c0_i32_0 : i32, i32
  }
  func.func @transform_3(%arg0: i32) -> (i32, i32) {
    %c0_i32 = arith.constant 0 : i32
    %c0_i32_0 = arith.constant 0 : i32
    %c0_i32_1 = arith.constant 0 : i32
    return %c0_i32, %c0_i32_0 : i32, i32
  }
  func.func @transform_4(%arg0: i32) -> (i32, i32) {
    %c0_i32 = arith.constant 0 : i32
    %c0_i32_0 = arith.constant 0 : i32
    return %arg0, %c0_i32 : i32, i32
  }
}

</mosaic_0001>

<llo_original>
// kernel: discriminator_wgan_forward.3
$region0: #{discriminator_wgan_forward.3}
  #allocation0 [shape = 'u32[]', space=smem, size = 0x4, offset = 0x4, fixed_abs, tag = 'smem constant byte address 0x4 - core index']
  #allocation1 [shape = 'u32[144,128]{1,0:T(1,128)}', space=vmem, size = 0x12000, scoped, tag = 'internal scratch']
  %s0 = inlined_call_operand.vmem [shape: bf16[512,27], index: 0, kind: input, shape index: {}]
  %s1 = inlined_call_operand.vmem [shape: bf16[27,8], index: 1, kind: input, shape index: {}]
  %s2 = inlined_call_operand.vmem [shape: f32[1,8], index: 2, kind: input, shape index: {}]
  %s3 = inlined_call_operand.vmem [shape: bf16[512,8], index: 3, kind: output, shape index: {}]
  %s4 = sld [smem:[#allocation0]]
  $region45: #{discriminator_wgan_forward.3} parent=0
    _
  %s6 = ssub.s32 1, %s4
  %s7 = scalar_select 0, %s6, %s4
  loop: start=0, step=1, limit=4
  $region2: #{discriminator_wgan_forward.3} parent=0 // loop_pre_header
    _
  $region3: #{discriminator_wgan_forward.3} parent=0 // loop_header
    %s9 = sphi 0, %s13
    %p10 = scmp.ge.s32.totalorder %s9, 4
    %s19 = sphi 0, %s21
    %s22 = sphi 0, %s19
    %s23 = sphi 0, %s22
    %s39 = sphi 0, %s23
    %s43 = sphi 0, %s43
    %s45 = sphi 0, %s43
    %s46 = sphi 0, %s45
    %s60 = sphi 0, %s46
    %s64 = sphi 0, %s64
    %s66 = sphi 0, %s64
    %s67 = sphi 0, %s66
    %s81 = sphi 0, %s67
    %s87 = sphi 0, %s89
    %s90 = sphi 0, %s87
    %s91 = sphi 0, %s90
    %s107 = sphi 0, %s91
  $region4: #{discriminator_wgan_forward.3} parent=0 // loop_header_branch
    %12 = sbr.rel (%p10) target = $region8
  $region5: #{discriminator_wgan_forward.3} parent=0 // loop_body
    %s14 = ssub.s32 %s9, 1
    %s15 = ssub.s32 %s9, 2
    %s16 = sadd.s32 %s9, 1
    %s17 = ssub.s32 %s9, %s16
    %p18 = scmp.eq.s32.totalorder %s17, 0
    %s20 = sadd.s32 %s19, 1
    %s21 = scalar_select %p18, %s19, %s20
    %p24 = pneg %p18
    %p25 = scmp.eq.s32.totalorder %s9, 1
    %p26 = por %p24, %p25
    %p27 = scmp.ne.s32.totalorder %s19, %s22
    %p28 = scmp.eq.s32.totalorder %s9, 0
    %p29 = por %p27, %p28
    %p30 = scmp.ne.s32.totalorder %s19, %s22
    %p31 = scmp.eq.s32.totalorder %s14, 1
    %p32 = por %p30, %p31
    %p33 = scmp.ne.s32.totalorder %s22, %s23
    %p34 = scmp.eq.s32.totalorder %s14, 0
    %p35 = por %p33, %p34
    %p36 = scmp.ne.s32.totalorder %s22, %s23
    %p37 = scmp.eq.s32.totalorder %s15, 1
    %p38 = por %p36, %p37
    %p40 = scmp.ne.s32.totalorder %s23, %s39
    %p41 = scmp.eq.s32.totalorder %s15, 0
    %p42 = por %p40, %p41
    %s44 = sadd.s32 %s43, 1
    %p47 = scmp.eq.s32.totalorder %s9, 1
    %p48 = scmp.ne.s32.totalorder %s43, %s45
    %p49 = scmp.eq.s32.totalorder %s9, 0
    %p50 = por %p48, %p49
    %p51 = scmp.ne.s32.totalorder %s43, %s45
    %p52 = scmp.eq.s32.totalorder %s14, 1
    %p53 = por %p51, %p52
    %p54 = scmp.ne.s32.totalorder %s45, %s46
    %p55 = scmp.eq.s32.totalorder %s14, 0
    %p56 = por %p54, %p55
    %p57 = scmp.ne.s32.totalorder %s45, %s46
    %p58 = scmp.eq.s32.totalorder %s15, 1
    %p59 = por %p57, %p58
    %p61 = scmp.ne.s32.totalorder %s46, %s60
    %p62 = scmp.eq.s32.totalorder %s15, 0
    %p63 = por %p61, %p62
    %s65 = sadd.s32 %s64, 1
    %p68 = scmp.eq.s32.totalorder %s9, 1
    %p69 = scmp.ne.s32.totalorder %s64, %s66
    %p70 = scmp.eq.s32.totalorder %s9, 0
    %p71 = por %p69, %p70
    %p72 = scmp.ne.s32.totalorder %s64, %s66
    %p73 = scmp.eq.s32.totalorder %s14, 1
    %p74 = por %p72, %p73
    %p75 = scmp.ne.s32.totalorder %s66, %s67
    %p76 = scmp.eq.s32.totalorder %s14, 0
    %p77 = por %p75, %p76
    %p78 = scmp.ne.s32.totalorder %s66, %s67
    %p79 = scmp.eq.s32.totalorder %s15, 1
    %p80 = por %p78, %p79
    %p82 = scmp.ne.s32.totalorder %s67, %s81
    %p83 = scmp.eq.s32.totalorder %s15, 0
    %p84 = por %p82, %p83
    %s85 = ssub.s32 %s9, %s16
    %p86 = scmp.eq.s32.totalorder %s85, 0
    %s88 = sadd.s32 %s87, 1
    %s89 = scalar_select %p86, %s87, %s88
    %p92 = pneg %p86
    %p93 = scmp.eq.s32.totalorder %s9, 1
    %p94 = por %p92, %p93
    %p95 = scmp.ne.s32.totalorder %s87, %s90
    %p96 = scmp.eq.s32.totalorder %s9, 0
    %p97 = por %p95, %p96
    %p98 = scmp.ne.s32.totalorder %s87, %s90
    %p99 = scmp.eq.s32.totalorder %s14, 1
    %p100 = por %p98, %p99
    %p101 = scmp.ne.s32.totalorder %s90, %s91
    %p102 = scmp.eq.s32.totalorder %s14, 0
    %p103 = por %p101, %p102
    %p104 = scmp.ne.s32.totalorder %s90, %s91
    %p105 = scmp.eq.s32.totalorder %s15, 1
    %p106 = por %p104, %p105
    %p108 = scmp.ne.s32.totalorder %s91, %s107
    %p109 = scmp.eq.s32.totalorder %s15, 0
    %p110 = por %p108, %p109
    %p111 = scmp.le.s32.totalorder 1, %s9
    %p112 = scmp.lt.s32.totalorder %s9, 3
    %p113 = pnand %p111, %p112
    %p114 = pneg %p113
    // Predicated region
    $region9: #{discriminator_wgan_forward.3} parent=5 // pred_check
      _
    $region10: #{discriminator_wgan_forward.3} parent=5 // pred_check_branch
      %116 = sbr.rel (%p113) target = $region12
    $region11: #{discriminator_wgan_forward.3} parent=5 // pred_region
      %s117 = ssub.s32 %s9, 1
      // Predicated region
      $region13: #{discriminator_wgan_forward.3} parent=11 // pred_check
        %p118 = pneg %p56
      $region14: #{discriminator_wgan_forward.3} parent=11 // pred_check_branch
        %120 = sbr.rel (%p118) target = $region16
      $region15: #{discriminator_wgan_forward.3} parent=11 // pred_region
        _
      $region16: #{discriminator_wgan_forward.3} parent=11 // pred_fallthru
        _
      // Predicated region
      $region17: #{discriminator_wgan_forward.3} parent=11 // pred_check
        %p121 = pneg %p77
      $region18: #{discriminator_wgan_forward.3} parent=11 // pred_check_branch
        %123 = sbr.rel (%p121) target = $region20
      $region19: #{discriminator_wgan_forward.3} parent=11 // pred_region
        _
      $region20: #{discriminator_wgan_forward.3} parent=11 // pred_fallthru
        _
    $region12: #{discriminator_wgan_forward.3} parent=5 // pred_fallthru
      _
    %p124 = scmp.lt.s32.totalorder %s9, 2
    // Predicated region
    $region21: #{discriminator_wgan_forward.3} parent=5 // pred_check
      %p125 = pneg %p124
    $region22: #{discriminator_wgan_forward.3} parent=5 // pred_check_branch
      %127 = sbr.rel (%p125) target = $region24
    $region23: #{discriminator_wgan_forward.3} parent=5 // pred_region
      // Predicated region
      $region25: #{discriminator_wgan_forward.3} parent=23 // pred_check
        %p128 = pneg %p29
      $region26: #{discriminator_wgan_forward.3} parent=23 // pred_check_branch
        %130 = sbr.rel (%p128) target = $region28
      $region27: #{discriminator_wgan_forward.3} parent=23 // pred_region
        %s131 = smul.u32 32, %s9
        %p132 = scmp.lt.s32.totalorder %s131, 63
        %s133 = scalar_select %p132, %s131, 63
        %s134 = smul.addr %s133, 4
        %s135 = scalar_lea.vmem %s0, %s134
        %s136 = smul.u32 32, %s9
      $region28: #{discriminator_wgan_forward.3} parent=23 // pred_fallthru
        _
    $region24: #{discriminator_wgan_forward.3} parent=5 // pred_fallthru
      _
    %p137 = scmp.le.s32.totalorder 1, %s9
    %p138 = scmp.lt.s32.totalorder %s9, 3
    %p139 = pnand %p137, %p138
    %p140 = pneg %p139
    // Predicated region
    $region29: #{discriminator_wgan_forward.3} parent=5 // pred_check
      _
    $region30: #{discriminator_wgan_forward.3} parent=5 // pred_check_branch
      %142 = sbr.rel (%p139) target = $region32
    $region31: #{discriminator_wgan_forward.3} parent=5 // pred_region
      %s143 = ssub.s32 %s9, 1
      %s144 = smul.u32 32, %s14
      %p145 = scmp.lt.s32.totalorder %s144, 63
      %s146 = scalar_select %p145, %s144, 63
      %s147 = smul.addr %s146, 4
      %s148 = scalar_lea.vmem %s0, %s147
      %p149 = pneg %p35
      %p150 = pneg %p32
      %p151 = pneg %p56
      %p152 = pneg %p53
      %p153 = pneg %p77
      %p154 = pneg %p74
      %p155 = pneg %p103
      %p156 = pneg %p100
      %s157 = smul.u32 32, %s14
      %p158 = scmp.lt.s32.totalorder %s157, 63
      %s159 = scalar_select %p158, %s157, 63
      %s160 = smul.addr %s159, 4
      %s161 = scalar_lea.vmem %s3, %s160
      %s162 = smul.u32 32, %s14
      %p163 = scmp.lt.s32.totalorder %s162, 63
      %s164 = scalar_select %p163, %s162, 63
      %s165 = smul.addr %s164, 4
      %s166 = scalar_lea.vmem %s0, %s165
      %s167 = smul.u32 32, %s14
      %s168 = smul.u32 32, %s14
      %p169 = scmp.lt.s32.totalorder %s168, 63
      %s170 = scalar_select %p169, %s168, 63
      %s171 = smul.addr %s170, 4
      %s172 = scalar_lea.vmem %s3, %s171
      %s173 = smul.u32 32, %s14
      %v175 = vld [vmem:[%s166] sm:$0xf]
      %v176 = vld [vmem:[%s166 + $0x4] sm:$0xf]
      %v177 = vld [vmem:[%s166 + $0x8] sm:$0xf]
      %v178 = vld [vmem:[%s166 + $0xc] sm:$0xf]
      %v179 = vld [vmem:[%s166 + $0x10] sm:$0xf]
      %v180 = vld [vmem:[%s166 + $0x14] sm:$0xf]
      %v181 = vld [vmem:[%s166 + $0x18] sm:$0xf]
      %v182 = vld [vmem:[%s166 + $0x1c] sm:$0xf]
      %v183 = vld [vmem:[%s166 + $0x20] sm:$0xf]
      %v184 = vld [vmem:[%s166 + $0x24] sm:$0xf]
      %v185 = vld [vmem:[%s166 + $0x28] sm:$0xf]
      %v186 = vld [vmem:[%s166 + $0x2c] sm:$0xf]
      %v187 = vld [vmem:[%s166 + $0x30] sm:$0xf]
      %v188 = vld [vmem:[%s166 + $0x34] sm:$0xf]
      %v189 = vld [vmem:[%s166 + $0x38] sm:$0xf]
      %v190 = vld [vmem:[%s166 + $0x3c] sm:$0xf]
      %v191 = vld [vmem:[%s166 + $0x40] sm:$0xf]
      %v192 = vld [vmem:[%s166 + $0x44] sm:$0xf]
      %v193 = vld [vmem:[%s166 + $0x48] sm:$0xf]
      %v194 = vld [vmem:[%s166 + $0x4c] sm:$0xf]
      %v195 = vld [vmem:[%s166 + $0x50] sm:$0xf]
      %v196 = vld [vmem:[%s166 + $0x54] sm:$0xf]
      %v197 = vld [vmem:[%s166 + $0x58] sm:$0xf]
      %v198 = vld [vmem:[%s166 + $0x5c] sm:$0xf]
      %v199 = vld [vmem:[%s166 + $0x60] sm:$0xf]
      %v200 = vld [vmem:[%s166 + $0x64] sm:$0xf]
      %v201 = vld [vmem:[%s166 + $0x68] sm:$0xf]
      %v202 = vld [vmem:[%s166 + $0x6c] sm:$0xf]
      %v203 = vld [vmem:[%s166 + $0x70] sm:$0xf]
      %v204 = vld [vmem:[%s166 + $0x74] sm:$0xf]
      %v205 = vld [vmem:[%s166 + $0x78] sm:$0xf]
      %v206 = vld [vmem:[%s166 + $0x7c] sm:$0xf]
      %v207 = vld [vmem:[%s1] sm:$0xf]
      %v208 = vld [vmem:[%s1 + $0x4] sm:$0xf]
      %v209 = vld [vmem:[%s1 + $0x8] sm:$0xf]
      %v210 = vld [vmem:[%s1 + $0xc] sm:$0x3]
      %v211 = vld [vmem:[%s2] sm:$0x1]
      %v213 = vlaneseq
      %v214 = vshrl.u32 %v213, 7
      %v215 = vsub.s32 0, %v214
      %v216 = vrot.slane %v211, %v215
      %v250 = vunpack.c.l.b16 %v175
      %v251 = vunpack.c.l.b16 %v176
      %v252 = vunpack.c.l.b16 %v177
      %v253 = vunpack.c.l.b16 %v178
      %v254 = vunpack.c.l.b16 %v179
      %v255 = vunpack.c.l.b16 %v180
      %v256 = vunpack.c.l.b16 %v181
      %v257 = vunpack.c.l.b16 %v182
      %v258 = vunpack.c.l.b16 %v183
      %v259 = vunpack.c.l.b16 %v184
      %v260 = vunpack.c.l.b16 %v185
      %v261 = vunpack.c.l.b16 %v186
      %v262 = vunpack.c.l.b16 %v187
      %v263 = vunpack.c.l.b16 %v188
      %v264 = vunpack.c.l.b16 %v189
      %v265 = vunpack.c.l.b16 %v190
      %v266 = vunpack.c.l.b16 %v191
      %v267 = vunpack.c.l.b16 %v192
      %v268 = vunpack.c.l.b16 %v193
      %v269 = vunpack.c.l.b16 %v194
      %v270 = vunpack.c.l.b16 %v195
      %v271 = vunpack.c.l.b16 %v196
      %v272 = vunpack.c.l.b16 %v197
      %v273 = vunpack.c.l.b16 %v198
      %v274 = vunpack.c.l.b16 %v199
      %v275 = vunpack.c.l.b16 %v200
      %v276 = vunpack.c.l.b16 %v201
      %v277 = vunpack.c.l.b16 %v202
      %v278 = vunpack.c.l.b16 %v203
      %v279 = vunpack.c.l.b16 %v204
      %v280 = vunpack.c.l.b16 %v205
      %v281 = vunpack.c.l.b16 %v206
      %v282 = vpack.c.b16 %v251, %v250
      %v283 = vpack.c.b16 %v253, %v252
      %v284 = vpack.c.b16 %v255, %v254
      %v285 = vpack.c.b16 %v257, %v256
      %v286 = vpack.c.b16 %v259, %v258
      %v287 = vpack.c.b16 %v261, %v260
      %v288 = vpack.c.b16 %v263, %v262
      %v289 = vpack.c.b16 %v265, %v264
      %v290 = vpack.c.b16 %v267, %v266
      %v291 = vpack.c.b16 %v269, %v268
      %v292 = vpack.c.b16 %v271, %v270
      %v293 = vpack.c.b16 %v273, %v272
      %v294 = vpack.c.b16 %v275, %v274
      %v295 = vpack.c.b16 %v277, %v276
      %v296 = vpack.c.b16 %v279, %v278
      %v297 = vpack.c.b16 %v281, %v280
      %v302 = vunpack.c.l.b16 %v207
      %v303 = vunpack.c.l.b16 %v208
      %v304 = vunpack.c.l.b16 %v209
      %v305 = vunpack.c.l.b16 %v210
      %v306 = vpack.c.b16 %v303, %v302
      %v307 = vpack.c.b16 %v305, %v304
      %vm309 = vcmask 220160
      %v311 = vsel %vm309, %v282, 0
      %v314 = vsel %vm309, %v283, 0
      %v317 = vsel %vm309, %v284, 0
      %v320 = vsel %vm309, %v285, 0
      %v323 = vsel %vm309, %v286, 0
      %v326 = vsel %vm309, %v287, 0
      %v329 = vsel %vm309, %v288, 0
      %v332 = vsel %vm309, %v289, 0
      %v335 = vsel %vm309, %v290, 0
      %v338 = vsel %vm309, %v291, 0
      %v341 = vsel %vm309, %v292, 0
      %v344 = vsel %vm309, %v293, 0
      %v347 = vsel %vm309, %v294, 0
      %v350 = vsel %vm309, %v295, 0
      %v353 = vsel %vm309, %v296, 0
      %v356 = vsel %vm309, %v297, 0
      %vm358 = vcmask 1044480
      %vm359 = vcmask 1045504
      %v360 = vsel %vm358, 4294967295, 65535
      %v361 = vsel %vm359, %v360, 0
      %v363 = vand.u32 %v307, %v361
      %365 = vmatprep.subr.bf16.mxu0 0
      %366 = vmatpush1.bf16.msra.mxu0 0
      %367 = vmatprep.subr.bf16.mxu0 0
      %368 = vmatpush1.bf16.msra.mxu0 0
      %369 = vmatprep.subr.bf16.mxu0 0
      %370 = vmatpush1.bf16.msra.mxu0 0
      %371 = vmatprep.subr.bf16.mxu0 0
      %372 = vmatpush1.bf16.msra.mxu0 0
      %373 = vmatprep.subr.bf16.mxu0 0
      %374 = vmatpush1.bf16.msra.mxu0 0
      %375 = vmatprep.subr.bf16.mxu0 0
      %376 = vmatpush1.bf16.msra.mxu0 0
      %377 = vmatprep.subr.bf16.mxu0 0
      %378 = vmatpush1.bf16.msra.mxu0 %v363
      %379 = vmatprep.subr.bf16.mxu0 0
      %380 = vmatpush1.bf16.msra.mxu0 %v306
      %381 = vmatprep.subr.bf16.mxu0 0
      %382 = vmatpush2.bf16.msra.mxu0 0
      %383 = vmatprep.subr.bf16.mxu0 0
      %384 = vmatpush2.bf16.msra.mxu0 0
      %385 = vmatprep.subr.bf16.mxu0 0
      %386 = vmatpush2.bf16.msra.mxu0 0
      %387 = vmatprep.subr.bf16.mxu0 0
      %388 = vmatpush2.bf16.msra.mxu0 0
      %389 = vmatprep.subr.bf16.mxu0 0
      %390 = vmatpush2.bf16.msra.mxu0 0
      %391 = vmatprep.subr.bf16.mxu0 0
      %392 = vmatpush2.bf16.msra.mxu0 0
      %393 = vmatprep.subr.bf16.mxu0 0
      %394 = vmatpush2.bf16.msra.mxu0 0
      %395 = vmatprep.subr.bf16.mxu0 0
      %396 = vmatpush2.bf16.msra.mxu0 0
      %397 = vmatprep.mubr.bf16.mxu0 0
      %398 = vmatmul.mubr.bf16.gmra.mxu0 %v311
      %v399 = vpop.f32.mrf.mxu0
      %v400 = vadd.f32 %v216, %v399
      %v401 = vpop.f32.mrf.mxu0
      %v402 = vpop.f32.mrf.mxu0
      %v403 = vadd.f32 %v216, %v402
      %v404 = vpop.f32.mrf.mxu0
      %405 = vmatprep.mubr.bf16.mxu0 0
      %406 = vmatmul.mubr.bf16.gmra.mxu0 %v314
      %v407 = vpop.f32.mrf.mxu0
      %v408 = vadd.f32 %v216, %v407
      %v409 = vpop.f32.mrf.mxu0
      %v410 = vpop.f32.mrf.mxu0
      %v411 = vadd.f32 %v216, %v410
      %v412 = vpop.f32.mrf.mxu0
      %413 = vmatprep.mubr.bf16.mxu0 0
      %414 = vmatmul.mubr.bf16.gmra.mxu0 %v317
      %v415 = vpop.f32.mrf.mxu0
      %v416 = vadd.f32 %v216, %v415
      %v417 = vpop.f32.mrf.mxu0
      %v418 = vpop.f32.mrf.mxu0
      %v419 = vadd.f32 %v216, %v418
      %v420 = vpop.f32.mrf.mxu0
      %421 = vmatprep.mubr.bf16.mxu0 0
      %422 = vmatmul.mubr.bf16.gmra.mxu0 %v320
      %v423 = vpop.f32.mrf.mxu0
      %v424 = vadd.f32 %v216, %v423
      %v425 = vpop.f32.mrf.mxu0
      %v426 = vpop.f32.mrf.mxu0
      %v427 = vadd.f32 %v216, %v426
      %v428 = vpop.f32.mrf.mxu0
      %429 = vmatprep.mubr.bf16.mxu0 0
      %430 = vmatmul.mubr.bf16.gmra.mxu0 %v323
      %v431 = vpop.f32.mrf.mxu0
      %v432 = vadd.f32 %v216, %v431
      %v433 = vpop.f32.mrf.mxu0
      %v434 = vpop.f32.mrf.mxu0
      %v435 = vadd.f32 %v216, %v434
      %v436 = vpop.f32.mrf.mxu0
      %437 = vmatprep.mubr.bf16.mxu0 0
      %438 = vmatmul.mubr.bf16.gmra.mxu0 %v326
      %v439 = vpop.f32.mrf.mxu0
      %v440 = vadd.f32 %v216, %v439
      %v441 = vpop.f32.mrf.mxu0
      %v442 = vpop.f32.mrf.mxu0
      %v443 = vadd.f32 %v216, %v442
      %v444 = vpop.f32.mrf.mxu0
      %445 = vmatprep.mubr.bf16.mxu0 0
      %446 = vmatmul.mubr.bf16.gmra.mxu0 %v329
      %v447 = vpop.f32.mrf.mxu0
      %v448 = vadd.f32 %v216, %v447
      %v449 = vpop.f32.mrf.mxu0
      %v450 = vpop.f32.mrf.mxu0
      %v451 = vadd.f32 %v216, %v450
      %v452 = vpop.f32.mrf.mxu0
      %453 = vmatprep.mubr.bf16.mxu0 0
      %454 = vmatmul.mubr.bf16.gmra.mxu0 %v332
      %v455 = vpop.f32.mrf.mxu0
      %v456 = vadd.f32 %v216, %v455
      %v457 = vpop.f32.mrf.mxu0
      %v458 = vpop.f32.mrf.mxu0
      %v459 = vadd.f32 %v216, %v458
      %v460 = vpop.f32.mrf.mxu0
      %461 = vmatprep.mubr.bf16.mxu0 0
      %462 = vmatmul.mubr.bf16.gmra.mxu0 %v335
      %v463 = vpop.f32.mrf.mxu0
      %v464 = vadd.f32 %v216, %v463
      %v465 = vpop.f32.mrf.mxu0
      %v466 = vpop.f32.mrf.mxu0
      %v467 = vadd.f32 %v216, %v466
      %v468 = vpop.f32.mrf.mxu0
      %469 = vmatprep.mubr.bf16.mxu0 0
      %470 = vmatmul.mubr.bf16.gmra.mxu0 %v338
      %v471 = vpop.f32.mrf.mxu0
      %v472 = vadd.f32 %v216, %v471
      %v473 = vpop.f32.mrf.mxu0
      %v474 = vpop.f32.mrf.mxu0
      %v475 = vadd.f32 %v216, %v474
      %v476 = vpop.f32.mrf.mxu0
      %477 = vmatprep.mubr.bf16.mxu0 0
      %478 = vmatmul.mubr.bf16.gmra.mxu0 %v341
      %v479 = vpop.f32.mrf.mxu0
      %v480 = vadd.f32 %v216, %v479
      %v481 = vpop.f32.mrf.mxu0
      %v482 = vpop.f32.mrf.mxu0
      %v483 = vadd.f32 %v216, %v482
      %v484 = vpop.f32.mrf.mxu0
      %485 = vmatprep.mubr.bf16.mxu0 0
      %486 = vmatmul.mubr.bf16.gmra.mxu0 %v344
      %v487 = vpop.f32.mrf.mxu0
      %v488 = vadd.f32 %v216, %v487
      %v489 = vpop.f32.mrf.mxu0
      %v490 = vpop.f32.mrf.mxu0
      %v491 = vadd.f32 %v216, %v490
      %v492 = vpop.f32.mrf.mxu0
      %493 = vmatprep.mubr.bf16.mxu0 0
      %494 = vmatmul.mubr.bf16.gmra.mxu0 %v347
      %v495 = vpop.f32.mrf.mxu0
      %v496 = vadd.f32 %v216, %v495
      %v497 = vpop.f32.mrf.mxu0
      %v498 = vpop.f32.mrf.mxu0
      %v499 = vadd.f32 %v216, %v498
      %v500 = vpop.f32.mrf.mxu0
      %501 = vmatprep.mubr.bf16.mxu0 0
      %502 = vmatmul.mubr.bf16.gmra.mxu0 %v350
      %v503 = vpop.f32.mrf.mxu0
      %v504 = vadd.f32 %v216, %v503
      %v505 = vpop.f32.mrf.mxu0
      %v506 = vpop.f32.mrf.mxu0
      %v507 = vadd.f32 %v216, %v506
      %v508 = vpop.f32.mrf.mxu0
      %509 = vmatprep.mubr.bf16.mxu0 0
      %510 = vmatmul.mubr.bf16.gmra.mxu0 %v353
      %v511 = vpop.f32.mrf.mxu0
      %v512 = vadd.f32 %v216, %v511
      %v513 = vpop.f32.mrf.mxu0
      %v514 = vpop.f32.mrf.mxu0
      %v515 = vadd.f32 %v216, %v514
      %v516 = vpop.f32.mrf.mxu0
      %517 = vmatprep.mubr.bf16.mxu0 0
      %518 = vmatmul.mubr.bf16.gmra.mxu0 %v356
      %v519 = vpop.f32.mrf.mxu0
      %v520 = vadd.f32 %v216, %v519
      %v521 = vpop.f32.mrf.mxu0
      %v522 = vpop.f32.mrf.mxu0
      %v523 = vadd.f32 %v216, %v522
      %v524 = vpop.f32.mrf.mxu0
      %525 = vdwg.mxu0
      %vm526 = vcmp.gt.f32.partialorder %v400, 0.0
      %vm527 = vcmp.gt.f32.partialorder %v403, 0.0
      %vm528 = vcmp.gt.f32.partialorder %v408, 0.0
      %vm529 = vcmp.gt.f32.partialorder %v411, 0.0
      %vm530 = vcmp.gt.f32.partialorder %v416, 0.0
      %vm531 = vcmp.gt.f32.partialorder %v419, 0.0
      %vm532 = vcmp.gt.f32.partialorder %v424, 0.0
      %vm533 = vcmp.gt.f32.partialorder %v427, 0.0
      %vm534 = vcmp.gt.f32.partialorder %v432, 0.0
      %vm535 = vcmp.gt.f32.partialorder %v435, 0.0
      %vm536 = vcmp.gt.f32.partialorder %v440, 0.0
      %vm537 = vcmp.gt.f32.partialorder %v443, 0.0
      %vm538 = vcmp.gt.f32.partialorder %v448, 0.0
      %vm539 = vcmp.gt.f32.partialorder %v451, 0.0
      %vm540 = vcmp.gt.f32.partialorder %v456, 0.0
      %vm541 = vcmp.gt.f32.partialorder %v459, 0.0
      %vm542 = vcmp.gt.f32.partialorder %v464, 0.0
      %vm543 = vcmp.gt.f32.partialorder %v467, 0.0
      %vm544 = vcmp.gt.f32.partialorder %v472, 0.0
      %vm545 = vcmp.gt.f32.partialorder %v475, 0.0
      %vm546 = vcmp.gt.f32.partialorder %v480, 0.0
      %vm547 = vcmp.gt.f32.partialorder %v483, 0.0
      %vm548 = vcmp.gt.f32.partialorder %v488, 0.0
      %vm549 = vcmp.gt.f32.partialorder %v491, 0.0
      %vm550 = vcmp.gt.f32.partialorder %v496, 0.0
      %vm551 = vcmp.gt.f32.partialorder %v499, 0.0
      %vm552 = vcmp.gt.f32.partialorder %v504, 0.0
      %vm553 = vcmp.gt.f32.partialorder %v507, 0.0
      %vm554 = vcmp.gt.f32.partialorder %v512, 0.0
      %vm555 = vcmp.gt.f32.partialorder %v515, 0.0
      %vm556 = vcmp.gt.f32.partialorder %v520, 0.0
      %vm557 = vcmp.gt.f32.partialorder %v523, 0.0
      %v558 = vmul.f32 %v400, 0.01
      %v559 = vmul.f32 %v403, 0.01
      %v560 = vmul.f32 %v408, 0.01
      %v561 = vmul.f32 %v411, 0.01
      %v562 = vmul.f32 %v416, 0.01
      %v563 = vmul.f32 %v419, 0.01
      %v564 = vmul.f32 %v424, 0.01
      %v565 = vmul.f32 %v427, 0.01
      %v566 = vmul.f32 %v432, 0.01
      %v567 = vmul.f32 %v435, 0.01
      %v568 = vmul.f32 %v440, 0.01
      %v569 = vmul.f32 %v443, 0.01
      %v570 = vmul.f32 %v448, 0.01
      %v571 = vmul.f32 %v451, 0.01
      %v572 = vmul.f32 %v456, 0.01
      %v573 = vmul.f32 %v459, 0.01
      %v574 = vmul.f32 %v464, 0.01
      %v575 = vmul.f32 %v467, 0.01
      %v576 = vmul.f32 %v472, 0.01
      %v577 = vmul.f32 %v475, 0.01
      %v578 = vmul.f32 %v480, 0.01
      %v579 = vmul.f32 %v483, 0.01
      %v580 = vmul.f32 %v488, 0.01
      %v581 = vmul.f32 %v491, 0.01
      %v582 = vmul.f32 %v496, 0.01
      %v583 = vmul.f32 %v499, 0.01
      %v584 = vmul.f32 %v504, 0.01
      %v585 = vmul.f32 %v507, 0.01
      %v586 = vmul.f32 %v512, 0.01
      %v587 = vmul.f32 %v515, 0.01
      %v588 = vmul.f32 %v520, 0.01
      %v589 = vmul.f32 %v523, 0.01
      %v590 = vsel %vm526, %v400, %v558
      %v591 = vsel %vm527, %v403, %v559
      %v592 = vsel %vm528, %v408, %v560
      %v593 = vsel %vm529, %v411, %v561
      %v594 = vsel %vm530, %v416, %v562
      %v595 = vsel %vm531, %v419, %v563
      %v596 = vsel %vm532, %v424, %v564
      %v597 = vsel %vm533, %v427, %v565
      %v598 = vsel %vm534, %v432, %v566
      %v599 = vsel %vm535, %v435, %v567
      %v600 = vsel %vm536, %v440, %v568
      %v601 = vsel %vm537, %v443, %v569
      %v602 = vsel %vm538, %v448, %v570
      %v603 = vsel %vm539, %v451, %v571
      %v604 = vsel %vm540, %v456, %v572
      %v605 = vsel %vm541, %v459, %v573
      %v606 = vsel %vm542, %v464, %v574
      %v607 = vsel %vm543, %v467, %v575
      %v608 = vsel %vm544, %v472, %v576
      %v609 = vsel %vm545, %v475, %v577
      %v610 = vsel %vm546, %v480, %v578
      %v611 = vsel %vm547, %v483, %v579
      %v612 = vsel %vm548, %v488, %v580
      %v613 = vsel %vm549, %v491, %v581
      %v614 = vsel %vm550, %v496, %v582
      %v615 = vsel %vm551, %v499, %v583
      %v616 = vsel %vm552, %v504, %v584
      %v617 = vsel %vm553, %v507, %v585
      %v618 = vsel %vm554, %v512, %v586
      %v619 = vsel %vm555, %v515, %v587
      %v620 = vsel %vm556, %v520, %v588
      %v621 = vsel %vm557, %v523, %v589
      %v622 = vpack.c.bf16 %v591, %v590
      %v623 = vpack.c.bf16 %v593, %v592
      %v624 = vpack.c.bf16 %v595, %v594
      %v625 = vpack.c.bf16 %v597, %v596
      %v626 = vpack.c.bf16 %v599, %v598
      %v627 = vpack.c.bf16 %v601, %v600
      %v628 = vpack.c.bf16 %v603, %v602
      %v629 = vpack.c.bf16 %v605, %v604
      %v630 = vpack.c.bf16 %v607, %v606
      %v631 = vpack.c.bf16 %v609, %v608
      %v632 = vpack.c.bf16 %v611, %v610
      %v633 = vpack.c.bf16 %v613, %v612
      %v634 = vpack.c.bf16 %v615, %v614
      %v635 = vpack.c.bf16 %v617, %v616
      %v636 = vpack.c.bf16 %v619, %v618
      %v637 = vpack.c.bf16 %v621, %v620
      %v654 = vunpack.c.l.b16 %v622
      %v655 = vunpack.c.h.b16 %v622
      %v656 = vunpack.c.l.b16 %v623
      %v657 = vunpack.c.h.b16 %v623
      %v658 = vunpack.c.l.b16 %v624
      %v659 = vunpack.c.h.b16 %v624
      %v660 = vunpack.c.l.b16 %v625
      %v661 = vunpack.c.h.b16 %v625
      %v662 = vunpack.c.l.b16 %v626
      %v663 = vunpack.c.h.b16 %v626
      %v664 = vunpack.c.l.b16 %v627
      %v665 = vunpack.c.h.b16 %v627
      %v666 = vunpack.c.l.b16 %v628
      %v667 = vunpack.c.h.b16 %v628
      %v668 = vunpack.c.l.b16 %v629
      %v669 = vunpack.c.h.b16 %v629
      %v670 = vunpack.c.l.b16 %v630
      %v671 = vunpack.c.h.b16 %v630
      %v672 = vunpack.c.l.b16 %v631
      %v673 = vunpack.c.h.b16 %v631
      %v674 = vunpack.c.l.b16 %v632
      %v675 = vunpack.c.h.b16 %v632
      %v676 = vunpack.c.l.b16 %v633
      %v677 = vunpack.c.h.b16 %v633
      %v678 = vunpack.c.l.b16 %v634
      %v679 = vunpack.c.h.b16 %v634
      %v680 = vunpack.c.l.b16 %v635
      %v681 = vunpack.c.h.b16 %v635
      %v682 = vunpack.c.l.b16 %v636
      %v683 = vunpack.c.h.b16 %v636
      %v684 = vunpack.c.l.b16 %v637
      %v685 = vunpack.c.h.b16 %v637
      %v686 = vpack.c.b16 %v654, %v654
      %v687 = vpack.c.b16 %v655, %v655
      %v688 = vpack.c.b16 %v656, %v656
      %v689 = vpack.c.b16 %v657, %v657
      %v690 = vpack.c.b16 %v658, %v658
      %v691 = vpack.c.b16 %v659, %v659
      %v692 = vpack.c.b16 %v660, %v660
      %v693 = vpack.c.b16 %v661, %v661
      %v694 = vpack.c.b16 %v662, %v662
      %v695 = vpack.c.b16 %v663, %v663
      %v696 = vpack.c.b16 %v664, %v664
      %v697 = vpack.c.b16 %v665, %v665
      %v698 = vpack.c.b16 %v666, %v666
      %v699 = vpack.c.b16 %v667, %v667
      %v700 = vpack.c.b16 %v668, %v668
      %v701 = vpack.c.b16 %v669, %v669
      %v702 = vpack.c.b16 %v670, %v670
      %v703 = vpack.c.b16 %v671, %v671
      %v704 = vpack.c.b16 %v672, %v672
      %v705 = vpack.c.b16 %v673, %v673
      %v706 = vpack.c.b16 %v674, %v674
      %v707 = vpack.c.b16 %v675, %v675
      %v708 = vpack.c.b16 %v676, %v676
      %v709 = vpack.c.b16 %v677, %v677
      %v710 = vpack.c.b16 %v678, %v678
      %v711 = vpack.c.b16 %v679, %v679
      %v712 = vpack.c.b16 %v680, %v680
      %v713 = vpack.c.b16 %v681, %v681
      %v714 = vpack.c.b16 %v682, %v682
      %v715 = vpack.c.b16 %v683, %v683
      %v716 = vpack.c.b16 %v684, %v684
      %v717 = vpack.c.b16 %v685, %v685
      %vm750 = vcmask 60416
      %751 = vst.msk [vmem:[%s172] sm:$0xf] %vm750, %v686
      %752 = vst.msk [vmem:[%s172 + $0x4] sm:$0xf] %vm750, %v687
      %753 = vst.msk [vmem:[%s172 + $0x8] sm:$0xf] %vm750, %v688
      %754 = vst.msk [vmem:[%s172 + $0xc] sm:$0xf] %vm750, %v689
      %755 = vst.msk [vmem:[%s172 + $0x10] sm:$0xf] %vm750, %v690
      %756 = vst.msk [vmem:[%s172 + $0x14] sm:$0xf] %vm750, %v691
      %757 = vst.msk [vmem:[%s172 + $0x18] sm:$0xf] %vm750, %v692
      %758 = vst.msk [vmem:[%s172 + $0x1c] sm:$0xf] %vm750, %v693
      %759 = vst.msk [vmem:[%s172 + $0x20] sm:$0xf] %vm750, %v694
      %760 = vst.msk [vmem:[%s172 + $0x24] sm:$0xf] %vm750, %v695
      %761 = vst.msk [vmem:[%s172 + $0x28] sm:$0xf] %vm750, %v696
      %762 = vst.msk [vmem:[%s172 + $0x2c] sm:$0xf] %vm750, %v697
      %763 = vst.msk [vmem:[%s172 + $0x30] sm:$0xf] %vm750, %v698
      %764 = vst.msk [vmem:[%s172 + $0x34] sm:$0xf] %vm750, %v699
      %765 = vst.msk [vmem:[%s172 + $0x38] sm:$0xf] %vm750, %v700
      %766 = vst.msk [vmem:[%s172 + $0x3c] sm:$0xf] %vm750, %v701
      %767 = vst.msk [vmem:[%s172 + $0x40] sm:$0xf] %vm750, %v702
      %768 = vst.msk [vmem:[%s172 + $0x44] sm:$0xf] %vm750, %v703
      %769 = vst.msk [vmem:[%s172 + $0x48] sm:$0xf] %vm750, %v704
      %770 = vst.msk [vmem:[%s172 + $0x4c] sm:$0xf] %vm750, %v705
      %771 = vst.msk [vmem:[%s172 + $0x50] sm:$0xf] %vm750, %v706
      %772 = vst.msk [vmem:[%s172 + $0x54] sm:$0xf] %vm750, %v707
      %773 = vst.msk [vmem:[%s172 + $0x58] sm:$0xf] %vm750, %v708
      %774 = vst.msk [vmem:[%s172 + $0x5c] sm:$0xf] %vm750, %v709
      %775 = vst.msk [vmem:[%s172 + $0x60] sm:$0xf] %vm750, %v710
      %776 = vst.msk [vmem:[%s172 + $0x64] sm:$0xf] %vm750, %v711
      %777 = vst.msk [vmem:[%s172 + $0x68] sm:$0xf] %vm750, %v712
      %778 = vst.msk [vmem:[%s172 + $0x6c] sm:$0xf] %vm750, %v713
      %779 = vst.msk [vmem:[%s172 + $0x70] sm:$0xf] %vm750, %v714
      %780 = vst.msk [vmem:[%s172 + $0x74] sm:$0xf] %vm750, %v715
      %781 = vst.msk [vmem:[%s172 + $0x78] sm:$0xf] %vm750, %v716
      %782 = vst.msk [vmem:[%s172 + $0x7c] sm:$0xf] %vm750, %v717
      %s783 = smul.u32 32, %s14
      %p784 = scmp.lt.s32.totalorder %s783, 63
      %s785 = scalar_select %p784, %s783, 63
      %s786 = smul.addr %s785, 4
      %s787 = scalar_lea.vmem %s3, %s786
      // Predicated region
      $region33: #{discriminator_wgan_forward.3} parent=31 // pred_check
        %p788 = pneg %p100
      $region34: #{discriminator_wgan_forward.3} parent=31 // pred_check_branch
        %790 = sbr.rel (%p788) target = $region36
      $region35: #{discriminator_wgan_forward.3} parent=31 // pred_region
        %s791 = smul.u32 32, %s14
      $region36: #{discriminator_wgan_forward.3} parent=31 // pred_fallthru
        _
    $region32: #{discriminator_wgan_forward.3} parent=5 // pred_fallthru
      _
    %p792 = scmp.le.s32.totalorder 2, %s9
    // Predicated region
    $region37: #{discriminator_wgan_forward.3} parent=5 // pred_check
      %p793 = pneg %p792
    $region38: #{discriminator_wgan_forward.3} parent=5 // pred_check_branch
      %795 = sbr.rel (%p793) target = $region40
    $region39: #{discriminator_wgan_forward.3} parent=5 // pred_region
      %s796 = ssub.s32 %s9, 2
      // Predicated region
      $region41: #{discriminator_wgan_forward.3} parent=39 // pred_check
        %p797 = pneg %p106
      $region42: #{discriminator_wgan_forward.3} parent=39 // pred_check_branch
        %799 = sbr.rel (%p797) target = $region44
      $region43: #{discriminator_wgan_forward.3} parent=39 // pred_region
        %s800 = smul.u32 32, %s15
        %p801 = scmp.lt.s32.totalorder %s800, 63
        %s802 = scalar_select %p801, %s800, 63
        %s803 = smul.addr %s802, 4
        %s804 = scalar_lea.vmem %s3, %s803
      $region44: #{discriminator_wgan_forward.3} parent=39 // pred_fallthru
        _
    $region40: #{discriminator_wgan_forward.3} parent=5 // pred_fallthru
      _
  $region6: #{discriminator_wgan_forward.3} parent=0 // loop_footer
    %s13 = sadd.s32 1, %s9
  $region7: #{discriminator_wgan_forward.3} parent=0 // loop_footer_branch
    %8 = sbr.rel target = $region3
  $region8: #{discriminator_wgan_forward.3} parent=0 // loop_exit
    _

// kernel: discriminator_wgan_forward.4
$region0: #{discriminator_wgan_forward.4}
  #allocation0 [shape = 'u32[]', space=smem, size = 0x4, offset = 0x4, fixed_abs, tag = 'smem constant byte address 0x4 - core index']
  #allocation1 [shape = 'u32[144,128]{1,0:T(1,128)}', space=vmem, size = 0x12000, scoped, tag = 'internal scratch']
  %s0 = inlined_call_operand.vmem [shape: bf16[2,9,9,32], index: 0, kind: input, shape index: {}]
  %s1 = inlined_call_operand.vmem [shape: bf16[4,32,16], index: 1, kind: input, shape index: {}]
  %s2 = inlined_call_operand.vmem [shape: f32[1,16], index: 2, kind: input, shape index: {}]
  %s3 = inlined_call_operand.vmem [shape: bf16[128,16], index: 3, kind: output, shape index: {}]
  %s4 = sld [smem:[#allocation0]]
  $region45: #{discriminator_wgan_forward.4} parent=0
    _
  %s6 = ssub.s32 1, %s4
  %s7 = scalar_select 0, %s6, %s4
  loop: start=0, step=1, limit=4
  $region2: #{discriminator_wgan_forward.4} parent=0 // loop_pre_header
    _
  $region3: #{discriminator_wgan_forward.4} parent=0 // loop_header
    %s9 = sphi 0, %s13
    %p10 = scmp.ge.s32.totalorder %s9, 4
    %s19 = sphi 0, %s21
    %s22 = sphi 0, %s19
    %s23 = sphi 0, %s22
    %s39 = sphi 0, %s23
    %s43 = sphi 0, %s43
    %s45 = sphi 0, %s43
    %s46 = sphi 0, %s45
    %s60 = sphi 0, %s46
    %s64 = sphi 0, %s64
    %s66 = sphi 0, %s64
    %s67 = sphi 0, %s66
    %s81 = sphi 0, %s67
    %s87 = sphi 0, %s89
    %s90 = sphi 0, %s87
    %s91 = sphi 0, %s90
    %s107 = sphi 0, %s91
  $region4: #{discriminator_wgan_forward.4} parent=0 // loop_header_branch
    %12 = sbr.rel (%p10) target = $region8
  $region5: #{discriminator_wgan_forward.4} parent=0 // loop_body
    %s14 = ssub.s32 %s9, 1
    %s15 = ssub.s32 %s9, 2
    %s16 = sadd.s32 %s9, 1
    %s17 = ssub.s32 %s9, %s16
    %p18 = scmp.eq.s32.totalorder %s17, 0
    %s20 = sadd.s32 %s19, 1
    %s21 = scalar_select %p18, %s19, %s20
    %p24 = pneg %p18
    %p25 = scmp.eq.s32.totalorder %s9, 1
    %p26 = por %p24, %p25
    %p27 = scmp.ne.s32.totalorder %s19, %s22
    %p28 = scmp.eq.s32.totalorder %s9, 0
    %p29 = por %p27, %p28
    %p30 = scmp.ne.s32.totalorder %s19, %s22
    %p31 = scmp.eq.s32.totalorder %s14, 1
    %p32 = por %p30, %p31
    %p33 = scmp.ne.s32.totalorder %s22, %s23
    %p34 = scmp.eq.s32.totalorder %s14, 0
    %p35 = por %p33, %p34
    %p36 = scmp.ne.s32.totalorder %s22, %s23
    %p37 = scmp.eq.s32.totalorder %s15, 1
    %p38 = por %p36, %p37
    %p40 = scmp.ne.s32.totalorder %s23, %s39
    %p41 = scmp.eq.s32.totalorder %s15, 0
    %p42 = por %p40, %p41
    %s44 = sadd.s32 %s43, 1
    %p47 = scmp.eq.s32.totalorder %s9, 1
    %p48 = scmp.ne.s32.totalorder %s43, %s45
    %p49 = scmp.eq.s32.totalorder %s9, 0
    %p50 = por %p48, %p49
    %p51 = scmp.ne.s32.totalorder %s43, %s45
    %p52 = scmp.eq.s32.totalorder %s14, 1
    %p53 = por %p51, %p52
    %p54 = scmp.ne.s32.totalorder %s45, %s46
    %p55 = scmp.eq.s32.totalorder %s14, 0
    %p56 = por %p54, %p55
    %p57 = scmp.ne.s32.totalorder %s45, %s46
    %p58 = scmp.eq.s32.totalorder %s15, 1
    %p59 = por %p57, %p58
    %p61 = scmp.ne.s32.totalorder %s46, %s60
    %p62 = scmp.eq.s32.totalorder %s15, 0
    %p63 = por %p61, %p62
    %s65 = sadd.s32 %s64, 1
    %p68 = scmp.eq.s32.totalorder %s9, 1
    %p69 = scmp.ne.s32.totalorder %s64, %s66
    %p70 = scmp.eq.s32.totalorder %s9, 0
    %p71 = por %p69, %p70
    %p72 = scmp.ne.s32.totalorder %s64, %s66
    %p73 = scmp.eq.s32.totalorder %s14, 1
    %p74 = por %p72, %p73
    %p75 = scmp.ne.s32.totalorder %s66, %s67
    %p76 = scmp.eq.s32.totalorder %s14, 0
    %p77 = por %p75, %p76
    %p78 = scmp.ne.s32.totalorder %s66, %s67
    %p79 = scmp.eq.s32.totalorder %s15, 1
    %p80 = por %p78, %p79
    %p82 = scmp.ne.s32.totalorder %s67, %s81
    %p83 = scmp.eq.s32.totalorder %s15, 0
    %p84 = por %p82, %p83
    %s85 = ssub.s32 %s9, %s16
    %p86 = scmp.eq.s32.totalorder %s85, 0
    %s88 = sadd.s32 %s87, 1
    %s89 = scalar_select %p86, %s87, %s88
    %p92 = pneg %p86
    %p93 = scmp.eq.s32.totalorder %s9, 1
    %p94 = por %p92, %p93
    %p95 = scmp.ne.s32.totalorder %s87, %s90
    %p96 = scmp.eq.s32.totalorder %s9, 0
    %p97 = por %p95, %p96
    %p98 = scmp.ne.s32.totalorder %s87, %s90
    %p99 = scmp.eq.s32.totalorder %s14, 1
    %p100 = por %p98, %p99
    %p101 = scmp.ne.s32.totalorder %s90, %s91
    %p102 = scmp.eq.s32.totalorder %s14, 0
    %p103 = por %p101, %p102
    %p104 = scmp.ne.s32.totalorder %s90, %s91
    %p105 = scmp.eq.s32.totalorder %s15, 1
    %p106 = por %p104, %p105
    %p108 = scmp.ne.s32.totalorder %s91, %s107
    %p109 = scmp.eq.s32.totalorder %s15, 0
    %p110 = por %p108, %p109
    %p111 = scmp.le.s32.totalorder 1, %s9
    %p112 = scmp.lt.s32.totalorder %s9, 3
    %p113 = pnand %p111, %p112
    %p114 = pneg %p113
    // Predicated region
    $region9: #{discriminator_wgan_forward.4} parent=5 // pred_check
      _
    $region10: #{discriminator_wgan_forward.4} parent=5 // pred_check_branch
      %116 = sbr.rel (%p113) target = $region12
    $region11: #{discriminator_wgan_forward.4} parent=5 // pred_region
      %s117 = ssub.s32 %s9, 1
      // Predicated region
      $region13: #{discriminator_wgan_forward.4} parent=11 // pred_check
        %p118 = pneg %p56
      $region14: #{discriminator_wgan_forward.4} parent=11 // pred_check_branch
        %120 = sbr.rel (%p118) target = $region16
      $region15: #{discriminator_wgan_forward.4} parent=11 // pred_region
        _
      $region16: #{discriminator_wgan_forward.4} parent=11 // pred_fallthru
        _
      // Predicated region
      $region17: #{discriminator_wgan_forward.4} parent=11 // pred_check
        %p121 = pneg %p77
      $region18: #{discriminator_wgan_forward.4} parent=11 // pred_check_branch
        %123 = sbr.rel (%p121) target = $region20
      $region19: #{discriminator_wgan_forward.4} parent=11 // pred_region
        _
      $region20: #{discriminator_wgan_forward.4} parent=11 // pred_fallthru
        _
    $region12: #{discriminator_wgan_forward.4} parent=5 // pred_fallthru
      _
    %p124 = scmp.lt.s32.totalorder %s9, 2
    // Predicated region
    $region21: #{discriminator_wgan_forward.4} parent=5 // pred_check
      %p125 = pneg %p124
    $region22: #{discriminator_wgan_forward.4} parent=5 // pred_check_branch
      %127 = sbr.rel (%p125) target = $region24
    $region23: #{discriminator_wgan_forward.4} parent=5 // pred_region
      // Predicated region
      $region25: #{discriminator_wgan_forward.4} parent=23 // pred_check
        %p128 = pneg %p29
      $region26: #{discriminator_wgan_forward.4} parent=23 // pred_check_branch
        %130 = sbr.rel (%p128) target = $region28
      $region27: #{discriminator_wgan_forward.4} parent=23 // pred_region
        %p131 = scmp.lt.s32.totalorder %s9, 1
        %s132 = scalar_select %p131, %s9, 1
        %s133 = smul.addr %s132, 18
        %s134 = smul.addr %s133, 4
        %s135 = scalar_lea.vmem %s0, %s134
      $region28: #{discriminator_wgan_forward.4} parent=23 // pred_fallthru
        _
    $region24: #{discriminator_wgan_forward.4} parent=5 // pred_fallthru
      _
    %p136 = scmp.le.s32.totalorder 1, %s9
    %p137 = scmp.lt.s32.totalorder %s9, 3
    %p138 = pnand %p136, %p137
    %p139 = pneg %p138
    // Predicated region
    $region29: #{discriminator_wgan_forward.4} parent=5 // pred_check
      _
    $region30: #{discriminator_wgan_forward.4} parent=5 // pred_check_branch
      %141 = sbr.rel (%p138) target = $region32
    $region31: #{discriminator_wgan_forward.4} parent=5 // pred_region
      %s142 = ssub.s32 %s9, 1
      %p143 = scmp.lt.s32.totalorder %s14, 1
      %s144 = scalar_select %p143, %s14, 1
      %s145 = smul.addr %s144, 18
      %s146 = smul.addr %s145, 4
      %s147 = scalar_lea.vmem %s0, %s146
      %p148 = pneg %p35
      %p149 = pneg %p32
      %p150 = pneg %p56
      %p151 = pneg %p53
      %p152 = pneg %p77
      %p153 = pneg %p74
      %p154 = pneg %p103
      %p155 = pneg %p100
      %s156 = smul.u32 8, %s14
      %p157 = scmp.lt.s32.totalorder %s156, 15
      %s158 = scalar_select %p157, %s156, 15
      %s159 = smul.addr %s158, 4
      %s160 = scalar_lea.vmem %s3, %s159
      %p161 = scmp.lt.s32.totalorder %s14, 1
      %s162 = scalar_select %p161, %s14, 1
      %s163 = smul.addr %s162, 18
      %s164 = smul.addr %s163, 4
      %s165 = scalar_lea.vmem %s0, %s164
      %s166 = smul.u32 8, %s14
      %p167 = scmp.lt.s32.totalorder %s166, 15
      %s168 = scalar_select %p167, %s166, 15
      %s169 = smul.addr %s168, 4
      %s170 = scalar_lea.vmem %s3, %s169
      %s171 = smul.u32 8, %s14
      %v173 = vld [vmem:[%s165] sm:$0xf]
      %v174 = vld [vmem:[%s165 + $0x8] sm:$0xf]
      %v175 = vld [vmem:[%s165 + $0x10] sm:$0xf]
      %v176 = vld [vmem:[%s165 + $0x18] sm:$0xf]
      %v177 = vld [vmem:[%s165 + $0x20] sm:$0xf]
      %v178 = vld [vmem:[%s165 + $0x28] sm:$0xf]
      %v179 = vld [vmem:[%s165 + $0x30] sm:$0xf]
      %v180 = vld [vmem:[%s165 + $0x38] sm:$0xf]
      %v181 = vld [vmem:[%s1] sm:$0xf]
      %v182 = vld [vmem:[%s1 + $0x4] sm:$0xf]
      %v183 = vld [vmem:[%s1 + $0x8] sm:$0xf]
      %v184 = vld [vmem:[%s1 + $0xc] sm:$0xf]
      %v185 = vld [vmem:[%s165 + $0x4] sm:$0x1]
      %v186 = vld [vmem:[%s165 + $0xc] sm:$0x1]
      %v187 = vld [vmem:[%s165 + $0x14] sm:$0x1]
      %v188 = vld [vmem:[%s165 + $0x1c] sm:$0x1]
      %v189 = vld [vmem:[%s165 + $0x24] sm:$0x1]
      %v190 = vld [vmem:[%s165 + $0x2c] sm:$0x1]
      %v191 = vld [vmem:[%s165 + $0x34] sm:$0x1]
      %v192 = vld [vmem:[%s165 + $0x3c] sm:$0x1]
      %vm193 = vsmask.f32 3328
      %vm194 = vsmask.f32 7440
      %vm195 = vmor %vm193, %vm194
      %v197 = vshrl.u32 %v173, 16
      %v199 = vrot.slane %v197, 4
      %v200 = vshll.u32 %v173, 16
      %v202 = vrot.slane %v200, 5
      %v203 = vor.u32 %v199, %v202
      %v204 = vrot.slane %v203, 4
      %v206 = vshll.u32 %v185, 16
      %v208 = vrot.slane %v206, 5
      %v209 = vsel %vm195, %v204, %v208
      %v211 = vshrl.u32 %v174, 16
      %v213 = vrot.slane %v211, 4
      %v214 = vshll.u32 %v174, 16
      %v216 = vrot.slane %v214, 5
      %v217 = vor.u32 %v213, %v216
      %v218 = vrot.slane %v217, 4
      %v220 = vshll.u32 %v186, 16
      %v222 = vrot.slane %v220, 5
      %v223 = vsel %vm195, %v218, %v222
      %v225 = vshrl.u32 %v175, 16
      %v227 = vrot.slane %v225, 4
      %v228 = vshll.u32 %v175, 16
      %v230 = vrot.slane %v228, 5
      %v231 = vor.u32 %v227, %v230
      %v232 = vrot.slane %v231, 4
      %v234 = vshll.u32 %v187, 16
      %v236 = vrot.slane %v234, 5
      %v237 = vsel %vm195, %v232, %v236
      %v239 = vshrl.u32 %v176, 16
      %v241 = vrot.slane %v239, 4
      %v242 = vshll.u32 %v176, 16
      %v244 = vrot.slane %v242, 5
      %v245 = vor.u32 %v241, %v244
      %v246 = vrot.slane %v245, 4
      %v248 = vshll.u32 %v188, 16
      %v250 = vrot.slane %v248, 5
      %v251 = vsel %vm195, %v246, %v250
      %v253 = vshrl.u32 %v177, 16
      %v255 = vrot.slane %v253, 4
      %v256 = vshll.u32 %v177, 16
      %v258 = vrot.slane %v256, 5
      %v259 = vor.u32 %v255, %v258
      %v260 = vrot.slane %v259, 4
      %v262 = vshll.u32 %v189, 16
      %v264 = vrot.slane %v262, 5
      %v265 = vsel %vm195, %v260, %v264
      %v267 = vshrl.u32 %v178, 16
      %v269 = vrot.slane %v267, 4
      %v270 = vshll.u32 %v178, 16
      %v272 = vrot.slane %v270, 5
      %v273 = vor.u32 %v269, %v272
      %v274 = vrot.slane %v273, 4
      %v276 = vshll.u32 %v190, 16
      %v278 = vrot.slane %v276, 5
      %v279 = vsel %vm195, %v274, %v278
      %v281 = vshrl.u32 %v179, 16
      %v283 = vrot.slane %v281, 4
      %v284 = vshll.u32 %v179, 16
      %v286 = vrot.slane %v284, 5
      %v287 = vor.u32 %v283, %v286
      %v288 = vrot.slane %v287, 4
      %v290 = vshll.u32 %v191, 16
      %v292 = vrot.slane %v290, 5
      %v293 = vsel %vm195, %v288, %v292
      %v295 = vshrl.u32 %v180, 16
      %v297 = vrot.slane %v295, 4
      %v298 = vshll.u32 %v180, 16
      %v300 = vrot.slane %v298, 5
      %v301 = vor.u32 %v297, %v300
      %v302 = vrot.slane %v301, 4
      %v304 = vshll.u32 %v192, 16
      %v306 = vrot.slane %v304, 5
      %v307 = vsel %vm195, %v302, %v306
      %s308 = scalar_lea.vmem %s1, 16
      %v309 = vld [vmem:[%s308] sm:$0xf]
      %v310 = vld [vmem:[%s308 + $0x4] sm:$0xf]
      %v311 = vld [vmem:[%s308 + $0x8] sm:$0xf]
      %v312 = vld [vmem:[%s308 + $0xc] sm:$0xf]
      %v313 = vunpack.c.l.b16 %v209
      %v314 = vunpack.c.l.b16 %v223
      %v315 = vunpack.c.l.b16 %v237
      %v316 = vunpack.c.l.b16 %v251
      %v317 = vunpack.c.l.b16 %v265
      %v318 = vunpack.c.l.b16 %v279
      %v319 = vunpack.c.l.b16 %v293
      %v320 = vunpack.c.l.b16 %v307
      %v321 = vpack.c.b16 %v314, %v313
      %v322 = vpack.c.b16 %v316, %v315
      %v323 = vpack.c.b16 %v318, %v317
      %v324 = vpack.c.b16 %v320, %v319
      %v329 = vunpack.c.l.b16 %v309
      %v330 = vunpack.c.l.b16 %v310
      %v331 = vunpack.c.l.b16 %v311
      %v332 = vunpack.c.l.b16 %v312
      %v333 = vpack.c.b16 %v330, %v329
      %v334 = vpack.c.b16 %v332, %v331
      %vm337 = vcmask 261120
      %v339 = vsel %vm337, %v321, 0
      %v342 = vsel %vm337, %v322, 0
      %v345 = vsel %vm337, %v323, 0
      %v348 = vsel %vm337, %v324, 0
      %350 = vmatprep.subr.bf16.mxu0 0
      %351 = vmatpush1.bf16.msra.mxu0 0
      %352 = vmatprep.subr.bf16.mxu0 0
      %353 = vmatpush1.bf16.msra.mxu0 0
      %354 = vmatprep.subr.bf16.mxu0 0
      %355 = vmatpush1.bf16.msra.mxu0 0
      %356 = vmatprep.subr.bf16.mxu0 0
      %357 = vmatpush1.bf16.msra.mxu0 0
      %358 = vmatprep.subr.bf16.mxu0 0
      %359 = vmatpush1.bf16.msra.mxu0 0
      %360 = vmatprep.subr.bf16.mxu0 0
      %361 = vmatpush1.bf16.msra.mxu0 0
      %362 = vmatprep.subr.bf16.mxu0 0
      %363 = vmatpush1.bf16.msra.mxu0 %v334
      %364 = vmatprep.subr.bf16.mxu0 0
      %365 = vmatpush1.bf16.msra.mxu0 %v333
      %366 = vmatprep.subr.bf16.mxu0 0
      %367 = vmatpush2.bf16.msra.mxu0 0
      %368 = vmatprep.subr.bf16.mxu0 0
      %369 = vmatpush2.bf16.msra.mxu0 0
      %370 = vmatprep.subr.bf16.mxu0 0
      %371 = vmatpush2.bf16.msra.mxu0 0
      %372 = vmatprep.subr.bf16.mxu0 0
      %373 = vmatpush2.bf16.msra.mxu0 0
      %374 = vmatprep.subr.bf16.mxu0 0
      %375 = vmatpush2.bf16.msra.mxu0 0
      %376 = vmatprep.subr.bf16.mxu0 0
      %377 = vmatpush2.bf16.msra.mxu0 0
      %378 = vmatprep.subr.bf16.mxu0 0
      %379 = vmatpush2.bf16.msra.mxu0 0
      %380 = vmatprep.subr.bf16.mxu0 0
      %381 = vmatpush2.bf16.msra.mxu0 0
      %382 = vmatprep.mubr.bf16.mxu0 0
      %383 = vmatmul.mubr.bf16.gmra.mxu0 %v339
      %v384 = vpop.f32.mrf.mxu0
      %v385 = vadd.f32 0.0, %v384
      %v386 = vpop.f32.mrf.mxu0
      %v387 = vpop.f32.mrf.mxu0
      %v388 = vadd.f32 0.0, %v387
      %v389 = vpop.f32.mrf.mxu0
      %390 = vmatprep.mubr.bf16.mxu0 0
      %391 = vmatmul.mubr.bf16.gmra.mxu0 %v342
      %v392 = vpop.f32.mrf.mxu0
      %v393 = vadd.f32 0.0, %v392
      %v394 = vpop.f32.mrf.mxu0
      %v395 = vpop.f32.mrf.mxu0
      %v396 = vadd.f32 0.0, %v395
      %v397 = vpop.f32.mrf.mxu0
      %398 = vmatprep.mubr.bf16.mxu0 0
      %399 = vmatmul.mubr.bf16.gmra.mxu0 %v345
      %v400 = vpop.f32.mrf.mxu0
      %v401 = vadd.f32 0.0, %v400
      %v402 = vpop.f32.mrf.mxu0
      %v403 = vpop.f32.mrf.mxu0
      %v404 = vadd.f32 0.0, %v403
      %v405 = vpop.f32.mrf.mxu0
      %406 = vmatprep.mubr.bf16.mxu0 0
      %407 = vmatmul.mubr.bf16.gmra.mxu0 %v348
      %v408 = vpop.f32.mrf.mxu0
      %v409 = vadd.f32 0.0, %v408
      %v410 = vpop.f32.mrf.mxu0
      %v411 = vpop.f32.mrf.mxu0
      %v412 = vadd.f32 0.0, %v411
      %v413 = vpop.f32.mrf.mxu0
      %414 = vdwg.mxu0
      %v423 = vunpack.c.l.b16 %v173
      %v424 = vunpack.c.l.b16 %v174
      %v425 = vunpack.c.l.b16 %v175
      %v426 = vunpack.c.l.b16 %v176
      %v427 = vunpack.c.l.b16 %v177
      %v428 = vunpack.c.l.b16 %v178
      %v429 = vunpack.c.l.b16 %v179
      %v430 = vunpack.c.l.b16 %v180
      %v431 = vpack.c.b16 %v424, %v423
      %v432 = vpack.c.b16 %v426, %v425
      %v433 = vpack.c.b16 %v428, %v427
      %v434 = vpack.c.b16 %v430, %v429
      %v439 = vunpack.c.l.b16 %v181
      %v440 = vunpack.c.l.b16 %v182
      %v441 = vunpack.c.l.b16 %v183
      %v442 = vunpack.c.l.b16 %v184
      %v443 = vpack.c.b16 %v440, %v439
      %v444 = vpack.c.b16 %v442, %v441
      %v448 = vsel %vm337, %v431, 0
      %v451 = vsel %vm337, %v432, 0
      %v454 = vsel %vm337, %v433, 0
      %v457 = vsel %vm337, %v434, 0
      %459 = vmatprep.subr.bf16.mxu0 0
      %460 = vmatpush1.bf16.msra.mxu0 0
      %461 = vmatprep.subr.bf16.mxu0 0
      %462 = vmatpush1.bf16.msra.mxu0 0
      %463 = vmatprep.subr.bf16.mxu0 0
      %464 = vmatpush1.bf16.msra.mxu0 0
      %465 = vmatprep.subr.bf16.mxu0 0
      %466 = vmatpush1.bf16.msra.mxu0 0
      %467 = vmatprep.subr.bf16.mxu0 0
      %468 = vmatpush1.bf16.msra.mxu0 0
      %469 = vmatprep.subr.bf16.mxu0 0
      %470 = vmatpush1.bf16.msra.mxu0 0
      %471 = vmatprep.subr.bf16.mxu0 0
      %472 = vmatpush1.bf16.msra.mxu0 %v444
      %473 = vmatprep.subr.bf16.mxu0 0
      %474 = vmatpush1.bf16.msra.mxu0 %v443
      %475 = vmatprep.subr.bf16.mxu0 0
      %476 = vmatpush2.bf16.msra.mxu0 0
      %477 = vmatprep.subr.bf16.mxu0 0
      %478 = vmatpush2.bf16.msra.mxu0 0
      %479 = vmatprep.subr.bf16.mxu0 0
      %480 = vmatpush2.bf16.msra.mxu0 0
      %481 = vmatprep.subr.bf16.mxu0 0
      %482 = vmatpush2.bf16.msra.mxu0 0
      %483 = vmatprep.subr.bf16.mxu0 0
      %484 = vmatpush2.bf16.msra.mxu0 0
      %485 = vmatprep.subr.bf16.mxu0 0
      %486 = vmatpush2.bf16.msra.mxu0 0
      %487 = vmatprep.subr.bf16.mxu0 0
      %488 = vmatpush2.bf16.msra.mxu0 0
      %489 = vmatprep.subr.bf16.mxu0 0
      %490 = vmatpush2.bf16.msra.mxu0 0
      %491 = vmatprep.mubr.bf16.mxu0 0
      %492 = vmatmul.mubr.bf16.gmra.mxu0 %v448
      %v493 = vpop.f32.mrf.mxu0
      %v494 = vadd.f32 %v385, %v493
      %v495 = vpop.f32.mrf.mxu0
      %v496 = vpop.f32.mrf.mxu0
      %v497 = vadd.f32 %v388, %v496
      %v498 = vpop.f32.mrf.mxu0
      %499 = vmatprep.mubr.bf16.mxu0 0
      %500 = vmatmul.mubr.bf16.gmra.mxu0 %v451
      %v501 = vpop.f32.mrf.mxu0
      %v502 = vadd.f32 %v393, %v501
      %v503 = vpop.f32.mrf.mxu0
      %v504 = vpop.f32.mrf.mxu0
      %v505 = vadd.f32 %v396, %v504
      %v506 = vpop.f32.mrf.mxu0
      %507 = vmatprep.mubr.bf16.mxu0 0
      %508 = vmatmul.mubr.bf16.gmra.mxu0 %v454
      %v509 = vpop.f32.mrf.mxu0
      %v510 = vadd.f32 %v401, %v509
      %v511 = vpop.f32.mrf.mxu0
      %v512 = vpop.f32.mrf.mxu0
      %v513 = vadd.f32 %v404, %v512
      %v514 = vpop.f32.mrf.mxu0
      %515 = vmatprep.mubr.bf16.mxu0 0
      %516 = vmatmul.mubr.bf16.gmra.mxu0 %v457
      %v517 = vpop.f32.mrf.mxu0
      %v518 = vadd.f32 %v409, %v517
      %v519 = vpop.f32.mrf.mxu0
      %v520 = vpop.f32.mrf.mxu0
      %v521 = vadd.f32 %v412, %v520
      %v522 = vpop.f32.mrf.mxu0
      %523 = vdwg.mxu0
      %s524 = scalar_lea.vmem %s165, 8
      %v525 = vld [vmem:[%s524] sm:$0xf]
      %v526 = vld [vmem:[%s524 + $0x8] sm:$0xf]
      %v527 = vld [vmem:[%s524 + $0x10] sm:$0xf]
      %v528 = vld [vmem:[%s524 + $0x18] sm:$0xf]
      %v529 = vld [vmem:[%s524 + $0x20] sm:$0xf]
      %v530 = vld [vmem:[%s524 + $0x28] sm:$0xf]
      %v531 = vld [vmem:[%s524 + $0x30] sm:$0xf]
      %v532 = vld [vmem:[%s524 + $0x38] sm:$0xf]
      %s533 = scalar_lea.vmem %s1, 32
      %v534 = vld [vmem:[%s533] sm:$0xf]
      %v535 = vld [vmem:[%s533 + $0x4] sm:$0xf]
      %v536 = vld [vmem:[%s533 + $0x8] sm:$0xf]
      %v537 = vld [vmem:[%s533 + $0xc] sm:$0xf]
      %v546 = vunpack.c.l.b16 %v525
      %v547 = vunpack.c.l.b16 %v526
      %v548 = vunpack.c.l.b16 %v527
      %v549 = vunpack.c.l.b16 %v528
      %v550 = vunpack.c.l.b16 %v529
      %v551 = vunpack.c.l.b16 %v530
      %v552 = vunpack.c.l.b16 %v531
      %v553 = vunpack.c.l.b16 %v532
      %v554 = vpack.c.b16 %v547, %v546
      %v555 = vpack.c.b16 %v549, %v548
      %v556 = vpack.c.b16 %v551, %v550
      %v557 = vpack.c.b16 %v553, %v552
      %v562 = vunpack.c.l.b16 %v534
      %v563 = vunpack.c.l.b16 %v535
      %v564 = vunpack.c.l.b16 %v536
      %v565 = vunpack.c.l.b16 %v537
      %v566 = vpack.c.b16 %v563, %v562
      %v567 = vpack.c.b16 %v565, %v564
      %v571 = vsel %vm337, %v554, 0
      %v574 = vsel %vm337, %v555, 0
      %v577 = vsel %vm337, %v556, 0
      %v580 = vsel %vm337, %v557, 0
      %582 = vmatprep.subr.bf16.mxu0 0
      %583 = vmatpush1.bf16.msra.mxu0 0
      %584 = vmatprep.subr.bf16.mxu0 0
      %585 = vmatpush1.bf16.msra.mxu0 0
      %586 = vmatprep.subr.bf16.mxu0 0
      %587 = vmatpush1.bf16.msra.mxu0 0
      %588 = vmatprep.subr.bf16.mxu0 0
      %589 = vmatpush1.bf16.msra.mxu0 0
      %590 = vmatprep.subr.bf16.mxu0 0
      %591 = vmatpush1.bf16.msra.mxu0 0
      %592 = vmatprep.subr.bf16.mxu0 0
      %593 = vmatpush1.bf16.msra.mxu0 0
      %594 = vmatprep.subr.bf16.mxu0 0
      %595 = vmatpush1.bf16.msra.mxu0 %v567
      %596 = vmatprep.subr.bf16.mxu0 0
      %597 = vmatpush1.bf16.msra.mxu0 %v566
      %598 = vmatprep.subr.bf16.mxu0 0
      %599 = vmatpush2.bf16.msra.mxu0 0
      %600 = vmatprep.subr.bf16.mxu0 0
      %601 = vmatpush2.bf16.msra.mxu0 0
      %602 = vmatprep.subr.bf16.mxu0 0
      %603 = vmatpush2.bf16.msra.mxu0 0
      %604 = vmatprep.subr.bf16.mxu0 0
      %605 = vmatpush2.bf16.msra.mxu0 0
      %606 = vmatprep.subr.bf16.mxu0 0
      %607 = vmatpush2.bf16.msra.mxu0 0
      %608 = vmatprep.subr.bf16.mxu0 0
      %609 = vmatpush2.bf16.msra.mxu0 0
      %610 = vmatprep.subr.bf16.mxu0 0
      %611 = vmatpush2.bf16.msra.mxu0 0
      %612 = vmatprep.subr.bf16.mxu0 0
      %613 = vmatpush2.bf16.msra.mxu0 0
      %614 = vmatprep.mubr.bf16.mxu0 0
      %615 = vmatmul.mubr.bf16.gmra.mxu0 %v571
      %v616 = vpop.f32.mrf.mxu0
      %v617 = vadd.f32 0.0, %v616
      %v618 = vpop.f32.mrf.mxu0
      %v619 = vpop.f32.mrf.mxu0
      %v620 = vadd.f32 0.0, %v619
      %v621 = vpop.f32.mrf.mxu0
      %622 = vmatprep.mubr.bf16.mxu0 0
      %623 = vmatmul.mubr.bf16.gmra.mxu0 %v574
      %v624 = vpop.f32.mrf.mxu0
      %v625 = vadd.f32 0.0, %v624
      %v626 = vpop.f32.mrf.mxu0
      %v627 = vpop.f32.mrf.mxu0
      %v628 = vadd.f32 0.0, %v627
      %v629 = vpop.f32.mrf.mxu0
      %630 = vmatprep.mubr.bf16.mxu0 0
      %631 = vmatmul.mubr.bf16.gmra.mxu0 %v577
      %v632 = vpop.f32.mrf.mxu0
      %v633 = vadd.f32 0.0, %v632
      %v634 = vpop.f32.mrf.mxu0
      %v635 = vpop.f32.mrf.mxu0
      %v636 = vadd.f32 0.0, %v635
      %v637 = vpop.f32.mrf.mxu0
      %638 = vmatprep.mubr.bf16.mxu0 0
      %639 = vmatmul.mubr.bf16.gmra.mxu0 %v580
      %v640 = vpop.f32.mrf.mxu0
      %v641 = vadd.f32 0.0, %v640
      %v642 = vpop.f32.mrf.mxu0
      %v643 = vpop.f32.mrf.mxu0
      %v644 = vadd.f32 0.0, %v643
      %v645 = vpop.f32.mrf.mxu0
      %646 = vdwg.mxu0
      %v647 = vadd.f32 %v494, %v617
      %v648 = vadd.f32 %v497, %v620
      %v649 = vadd.f32 %v502, %v625
      %v650 = vadd.f32 %v505, %v628
      %v651 = vadd.f32 %v510, %v633
      %v652 = vadd.f32 %v513, %v636
      %v653 = vadd.f32 %v518, %v641
      %v654 = vadd.f32 %v521, %v644
      %v655 = vld [vmem:[%s524] sm:$0xf]
      %v656 = vld [vmem:[%s524 + $0x4] sm:$0x1]
      %v657 = vld [vmem:[%s524 + $0x8] sm:$0xf]
      %v658 = vld [vmem:[%s524 + $0xc] sm:$0x1]
      %v659 = vld [vmem:[%s524 + $0x10] sm:$0xf]
      %v660 = vld [vmem:[%s524 + $0x14] sm:$0x1]
      %v661 = vld [vmem:[%s524 + $0x18] sm:$0xf]
      %v662 = vld [vmem:[%s524 + $0x1c] sm:$0x1]
      %v663 = vld [vmem:[%s524 + $0x20] sm:$0xf]
      %v664 = vld [vmem:[%s524 + $0x24] sm:$0x1]
      %v665 = vld [vmem:[%s524 + $0x28] sm:$0xf]
      %v666 = vld [vmem:[%s524 + $0x2c] sm:$0x1]
      %v667 = vld [vmem:[%s524 + $0x30] sm:$0xf]
      %v668 = vld [vmem:[%s524 + $0x34] sm:$0x1]
      %v669 = vld [vmem:[%s524 + $0x38] sm:$0xf]
      %v670 = vld [vmem:[%s524 + $0x3c] sm:$0x1]
      %v672 = vshrl.u32 %v655, 16
      %v674 = vrot.slane %v672, 4
      %v675 = vshll.u32 %v655, 16
      %v677 = vrot.slane %v675, 5
      %v678 = vor.u32 %v674, %v677
      %v679 = vrot.slane %v678, 4
      %v681 = vshll.u32 %v656, 16
      %v683 = vrot.slane %v681, 5
      %v684 = vsel %vm195, %v679, %v683
      %v686 = vshrl.u32 %v657, 16
      %v688 = vrot.slane %v686, 4
      %v689 = vshll.u32 %v657, 16
      %v691 = vrot.slane %v689, 5
      %v692 = vor.u32 %v688, %v691
      %v693 = vrot.slane %v692, 4
      %v695 = vshll.u32 %v658, 16
      %v697 = vrot.slane %v695, 5
      %v698 = vsel %vm195, %v693, %v697
      %v700 = vshrl.u32 %v659, 16
      %v702 = vrot.slane %v700, 4
      %v703 = vshll.u32 %v659, 16
      %v705 = vrot.slane %v703, 5
      %v706 = vor.u32 %v702, %v705
      %v707 = vrot.slane %v706, 4
      %v709 = vshll.u32 %v660, 16
      %v711 = vrot.slane %v709, 5
      %v712 = vsel %vm195, %v707, %v711
      %v714 = vshrl.u32 %v661, 16
      %v716 = vrot.slane %v714, 4
      %v717 = vshll.u32 %v661, 16
      %v719 = vrot.slane %v717, 5
      %v720 = vor.u32 %v716, %v719
      %v721 = vrot.slane %v720, 4
      %v723 = vshll.u32 %v662, 16
      %v725 = vrot.slane %v723, 5
      %v726 = vsel %vm195, %v721, %v725
      %v728 = vshrl.u32 %v663, 16
      %v730 = vrot.slane %v728, 4
      %v731 = vshll.u32 %v663, 16
      %v733 = vrot.slane %v731, 5
      %v734 = vor.u32 %v730, %v733
      %v735 = vrot.slane %v734, 4
      %v737 = vshll.u32 %v664, 16
      %v739 = vrot.slane %v737, 5
      %v740 = vsel %vm195, %v735, %v739
      %v742 = vshrl.u32 %v665, 16
      %v744 = vrot.slane %v742, 4
      %v745 = vshll.u32 %v665, 16
      %v747 = vrot.slane %v745, 5
      %v748 = vor.u32 %v744, %v747
      %v749 = vrot.slane %v748, 4
      %v751 = vshll.u32 %v666, 16
      %v753 = vrot.slane %v751, 5
      %v754 = vsel %vm195, %v749, %v753
      %v756 = vshrl.u32 %v667, 16
      %v758 = vrot.slane %v756, 4
      %v759 = vshll.u32 %v667, 16
      %v761 = vrot.slane %v759, 5
      %v762 = vor.u32 %v758, %v761
      %v763 = vrot.slane %v762, 4
      %v765 = vshll.u32 %v668, 16
      %v767 = vrot.slane %v765, 5
      %v768 = vsel %vm195, %v763, %v767
      %v770 = vshrl.u32 %v669, 16
      %v772 = vrot.slane %v770, 4
      %v773 = vshll.u32 %v669, 16
      %v775 = vrot.slane %v773, 5
      %v776 = vor.u32 %v772, %v775
      %v777 = vrot.slane %v776, 4
      %v779 = vshll.u32 %v670, 16
      %v781 = vrot.slane %v779, 5
      %v782 = vsel %vm195, %v777, %v781
      %s783 = scalar_lea.vmem %s1, 48
      %v784 = vld [vmem:[%s783] sm:$0xf]
      %v785 = vld [vmem:[%s783 + $0x4] sm:$0xf]
      %v786 = vld [vmem:[%s783 + $0x8] sm:$0xf]
      %v787 = vld [vmem:[%s783 + $0xc] sm:$0xf]
      %v788 = vunpack.c.l.b16 %v684
      %v789 = vunpack.c.l.b16 %v698
      %v790 = vunpack.c.l.b16 %v712
      %v791 = vunpack.c.l.b16 %v726
      %v792 = vunpack.c.l.b16 %v740
      %v793 = vunpack.c.l.b16 %v754
      %v794 = vunpack.c.l.b16 %v768
      %v795 = vunpack.c.l.b16 %v782
      %v796 = vpack.c.b16 %v789, %v788
      %v797 = vpack.c.b16 %v791, %v790
      %v798 = vpack.c.b16 %v793, %v792
      %v799 = vpack.c.b16 %v795, %v794
      %v804 = vunpack.c.l.b16 %v784
      %v805 = vunpack.c.l.b16 %v785
      %v806 = vunpack.c.l.b16 %v786
      %v807 = vunpack.c.l.b16 %v787
      %v808 = vpack.c.b16 %v805, %v804
      %v809 = vpack.c.b16 %v807, %v806
      %v813 = vsel %vm337, %v796, 0
      %v816 = vsel %vm337, %v797, 0
      %v819 = vsel %vm337, %v798, 0
      %v822 = vsel %vm337, %v799, 0
      %824 = vmatprep.subr.bf16.mxu0 0
      %825 = vmatpush1.bf16.msra.mxu0 0
      %826 = vmatprep.subr.bf16.mxu0 0
      %827 = vmatpush1.bf16.msra.mxu0 0
      %828 = vmatprep.subr.bf16.mxu0 0
      %829 = vmatpush1.bf16.msra.mxu0 0
      %830 = vmatprep.subr.bf16.mxu0 0
      %831 = vmatpush1.bf16.msra.mxu0 0
      %832 = vmatprep.subr.bf16.mxu0 0
      %833 = vmatpush1.bf16.msra.mxu0 0
      %834 = vmatprep.subr.bf16.mxu0 0
      %835 = vmatpush1.bf16.msra.mxu0 0
      %836 = vmatprep.subr.bf16.mxu0 0
      %837 = vmatpush1.bf16.msra.mxu0 %v809
      %838 = vmatprep.subr.bf16.mxu0 0
      %839 = vmatpush1.bf16.msra.mxu0 %v808
      %840 = vmatprep.subr.bf16.mxu0 0
      %841 = vmatpush2.bf16.msra.mxu0 0
      %842 = vmatprep.subr.bf16.mxu0 0
      %843 = vmatpush2.bf16.msra.mxu0 0
      %844 = vmatprep.subr.bf16.mxu0 0
      %845 = vmatpush2.bf16.msra.mxu0 0
      %846 = vmatprep.subr.bf16.mxu0 0
      %847 = vmatpush2.bf16.msra.mxu0 0
      %848 = vmatprep.subr.bf16.mxu0 0
      %849 = vmatpush2.bf16.msra.mxu0 0
      %850 = vmatprep.subr.bf16.mxu0 0
      %851 = vmatpush2.bf16.msra.mxu0 0
      %852 = vmatprep.subr.bf16.mxu0 0
      %853 = vmatpush2.bf16.msra.mxu0 0
      %854 = vmatprep.subr.bf16.mxu0 0
      %855 = vmatpush2.bf16.msra.mxu0 0
      %856 = vmatprep.mubr.bf16.mxu0 0
      %857 = vmatmul.mubr.bf16.gmra.mxu0 %v813
      %v858 = vpop.f32.mrf.mxu0
      %v859 = vadd.f32 0.0, %v858
      %v860 = vpop.f32.mrf.mxu0
      %v861 = vpop.f32.mrf.mxu0
      %v862 = vadd.f32 0.0, %v861
      %v863 = vpop.f32.mrf.mxu0
      %864 = vmatprep.mubr.bf16.mxu0 0
      %865 = vmatmul.mubr.bf16.gmra.mxu0 %v816
      %v866 = vpop.f32.mrf.mxu0
      %v867 = vadd.f32 0.0, %v866
      %v868 = vpop.f32.mrf.mxu0
      %v869 = vpop.f32.mrf.mxu0
      %v870 = vadd.f32 0.0, %v869
      %v871 = vpop.f32.mrf.mxu0
      %872 = vmatprep.mubr.bf16.mxu0 0
      %873 = vmatmul.mubr.bf16.gmra.mxu0 %v819
      %v874 = vpop.f32.mrf.mxu0
      %v875 = vadd.f32 0.0, %v874
      %v876 = vpop.f32.mrf.mxu0
      %v877 = vpop.f32.mrf.mxu0
      %v878 = vadd.f32 0.0, %v877
      %v879 = vpop.f32.mrf.mxu0
      %880 = vmatprep.mubr.bf16.mxu0 0
      %881 = vmatmul.mubr.bf16.gmra.mxu0 %v822
      %v882 = vpop.f32.mrf.mxu0
      %v883 = vadd.f32 0.0, %v882
      %v884 = vpop.f32.mrf.mxu0
      %v885 = vpop.f32.mrf.mxu0
      %v886 = vadd.f32 0.0, %v885
      %v887 = vpop.f32.mrf.mxu0
      %888 = vdwg.mxu0
      %v889 = vadd.f32 %v647, %v859
      %v890 = vadd.f32 %v648, %v862
      %v891 = vadd.f32 %v649, %v867
      %v892 = vadd.f32 %v650, %v870
      %v893 = vadd.f32 %v651, %v875
      %v894 = vadd.f32 %v652, %v878
      %v895 = vadd.f32 %v653, %v883
      %v896 = vadd.f32 %v654, %v886
      %v897 = vld [vmem:[%s2] sm:$0x1]
      %v899 = vlaneseq
      %v900 = vshrl.u32 %v899, 7
      %v901 = vsub.s32 0, %v900
      %v902 = vrot.slane %v897, %v901
      %v904 = vadd.f32 %v889, %v902
      %v905 = vadd.f32 %v890, %v902
      %v906 = vadd.f32 %v891, %v902
      %v907 = vadd.f32 %v892, %v902
      %v908 = vadd.f32 %v893, %v902
      %v909 = vadd.f32 %v894, %v902
      %v910 = vadd.f32 %v895, %v902
      %v911 = vadd.f32 %v896, %v902
      %vm912 = vcmp.gt.f32.partialorder %v904, 0.0
      %vm913 = vcmp.gt.f32.partialorder %v905, 0.0
      %vm914 = vcmp.gt.f32.partialorder %v906, 0.0
      %vm915 = vcmp.gt.f32.partialorder %v907, 0.0
      %vm916 = vcmp.gt.f32.partialorder %v908, 0.0
      %vm917 = vcmp.gt.f32.partialorder %v909, 0.0
      %vm918 = vcmp.gt.f32.partialorder %v910, 0.0
      %vm919 = vcmp.gt.f32.partialorder %v911, 0.0
      %v920 = vmul.f32 %v904, 0.01
      %v921 = vmul.f32 %v905, 0.01
      %v922 = vmul.f32 %v906, 0.01
      %v923 = vmul.f32 %v907, 0.01
      %v924 = vmul.f32 %v908, 0.01
      %v925 = vmul.f32 %v909, 0.01
      %v926 = vmul.f32 %v910, 0.01
      %v927 = vmul.f32 %v911, 0.01
      %v928 = vsel %vm912, %v904, %v920
      %v929 = vsel %vm913, %v905, %v921
      %v930 = vsel %vm914, %v906, %v922
      %v931 = vsel %vm915, %v907, %v923
      %v932 = vsel %vm916, %v908, %v924
      %v933 = vsel %vm917, %v909, %v925
      %v934 = vsel %vm918, %v910, %v926
      %v935 = vsel %vm919, %v911, %v927
      %v936 = vpack.c.bf16 %v929, %v928
      %v937 = vpack.c.bf16 %v931, %v930
      %v938 = vpack.c.bf16 %v933, %v932
      %v939 = vpack.c.bf16 %v935, %v934
      %v944 = vunpack.c.l.b16 %v936
      %v945 = vunpack.c.h.b16 %v936
      %v946 = vunpack.c.l.b16 %v937
      %v947 = vunpack.c.h.b16 %v937
      %v948 = vunpack.c.l.b16 %v938
      %v949 = vunpack.c.h.b16 %v938
      %v950 = vunpack.c.l.b16 %v939
      %v951 = vunpack.c.h.b16 %v939
      %v952 = vpack.c.b16 %v944, %v944
      %v953 = vpack.c.b16 %v945, %v945
      %v954 = vpack.c.b16 %v946, %v946
      %v955 = vpack.c.b16 %v947, %v947
      %v956 = vpack.c.b16 %v948, %v948
      %v957 = vpack.c.b16 %v949, %v949
      %v958 = vpack.c.b16 %v950, %v950
      %v959 = vpack.c.b16 %v951, %v951
      %vm968 = vcmask 125952
      %969 = vst.msk [vmem:[%s170] sm:$0xf] %vm968, %v952
      %970 = vst.msk [vmem:[%s170 + $0x4] sm:$0xf] %vm968, %v953
      %971 = vst.msk [vmem:[%s170 + $0x8] sm:$0xf] %vm968, %v954
      %972 = vst.msk [vmem:[%s170 + $0xc] sm:$0xf] %vm968, %v955
      %973 = vst.msk [vmem:[%s170 + $0x10] sm:$0xf] %vm968, %v956
      %974 = vst.msk [vmem:[%s170 + $0x14] sm:$0xf] %vm968, %v957
      %975 = vst.msk [vmem:[%s170 + $0x18] sm:$0xf] %vm968, %v958
      %976 = vst.msk [vmem:[%s170 + $0x1c] sm:$0xf] %vm968, %v959
      %s977 = smul.u32 8, %s14
      %p978 = scmp.lt.s32.totalorder %s977, 15
      %s979 = scalar_select %p978, %s977, 15
      %s980 = smul.addr %s979, 4
      %s981 = scalar_lea.vmem %s3, %s980
      // Predicated region
      $region33: #{discriminator_wgan_forward.4} parent=31 // pred_check
        %p982 = pneg %p100
      $region34: #{discriminator_wgan_forward.4} parent=31 // pred_check_branch
        %984 = sbr.rel (%p982) target = $region36
      $region35: #{discriminator_wgan_forward.4} parent=31 // pred_region
        %s985 = smul.u32 8, %s14
      $region36: #{discriminator_wgan_forward.4} parent=31 // pred_fallthru
        _
    $region32: #{discriminator_wgan_forward.4} parent=5 // pred_fallthru
      _
    %p986 = scmp.le.s32.totalorder 2, %s9
    // Predicated region
    $region37: #{discriminator_wgan_forward.4} parent=5 // pred_check
      %p987 = pneg %p986
    $region38: #{discriminator_wgan_forward.4} parent=5 // pred_check_branch
      %989 = sbr.rel (%p987) target = $region40
    $region39: #{discriminator_wgan_forward.4} parent=5 // pred_region
      %s990 = ssub.s32 %s9, 2
      // Predicated region
      $region41: #{discriminator_wgan_forward.4} parent=39 // pred_check
        %p991 = pneg %p106
      $region42: #{discriminator_wgan_forward.4} parent=39 // pred_check_branch
        %993 = sbr.rel (%p991) target = $region44
      $region43: #{discriminator_wgan_forward.4} parent=39 // pred_region
        %s994 = smul.u32 8, %s15
        %p995 = scmp.lt.s32.totalorder %s994, 15
        %s996 = scalar_select %p995, %s994, 15
        %s997 = smul.addr %s996, 4
        %s998 = scalar_lea.vmem %s3, %s997
      $region44: #{discriminator_wgan_forward.4} parent=39 // pred_fallthru
        _
    $region40: #{discriminator_wgan_forward.4} parent=5 // pred_fallthru
      _
  $region6: #{discriminator_wgan_forward.4} parent=0 // loop_footer
    %s13 = sadd.s32 1, %s9
  $region7: #{discriminator_wgan_forward.4} parent=0 // loop_footer_branch
    %8 = sbr.rel target = $region3
  $region8: #{discriminator_wgan_forward.4} parent=0 // loop_exit
    _

// kernel: discriminator_wgan_forward.5
$region0: #{discriminator_wgan_forward.5}
  #allocation0 [shape = 'u32[]', space=smem, size = 0x4, offset = 0x4, fixed_abs, tag = 'smem constant byte address 0x4 - core index']
  #allocation1 [shape = 'u32[144,128]{1,0:T(1,128)}', space=vmem, size = 0x12000, scoped, tag = 'internal scratch']
  %s0 = inlined_call_operand.vmem [shape: bf16[2,5,5,64], index: 0, kind: input, shape index: {}]
  %s1 = inlined_call_operand.vmem [shape: bf16[4,64,32], index: 1, kind: input, shape index: {}]
  %s2 = inlined_call_operand.vmem [shape: f32[1,32], index: 2, kind: input, shape index: {}]
  %s3 = inlined_call_operand.vmem [shape: f32[16,32], index: 3, kind: input, shape index: {}]
  %s4 = inlined_call_operand.vmem [shape: f32[2,1], index: 4, kind: output, shape index: {}]
  %s5 = sld [smem:[#allocation0]]
  $region26: #{discriminator_wgan_forward.5} parent=0
    _
  %s7 = ssub.s32 1, %s5
  %s8 = scalar_select 0, %s7, %s5
  // Predicated region
  $region2: #{discriminator_wgan_forward.5} parent=0 // pred_check
    _
  $region3: #{discriminator_wgan_forward.5} parent=0 // pred_check_branch
    %10 = sbr.rel (0) target = $region5
  $region4: #{discriminator_wgan_forward.5} parent=0 // pred_region
    _
  $region5: #{discriminator_wgan_forward.5} parent=0 // pred_fallthru
    _
  // Predicated region
  $region6: #{discriminator_wgan_forward.5} parent=0 // pred_check
    _
  $region7: #{discriminator_wgan_forward.5} parent=0 // pred_check_branch
    %12 = sbr.rel (0) target = $region9
  $region8: #{discriminator_wgan_forward.5} parent=0 // pred_region
    _
  $region9: #{discriminator_wgan_forward.5} parent=0 // pred_fallthru
    _
  // Predicated region
  $region10: #{discriminator_wgan_forward.5} parent=0 // pred_check
    _
  $region11: #{discriminator_wgan_forward.5} parent=0 // pred_check_branch
    %14 = sbr.rel (0) target = $region13
  $region12: #{discriminator_wgan_forward.5} parent=0 // pred_region
    _
  $region13: #{discriminator_wgan_forward.5} parent=0 // pred_fallthru
    _
  // Predicated region
  $region14: #{discriminator_wgan_forward.5} parent=0 // pred_check
    _
  $region15: #{discriminator_wgan_forward.5} parent=0 // pred_check_branch
    %16 = sbr.rel (0) target = $region17
  $region16: #{discriminator_wgan_forward.5} parent=0 // pred_region
    _
  $region17: #{discriminator_wgan_forward.5} parent=0 // pred_fallthru
    _
  %v18 = vld [vmem:[%s0] sm:$0x3]
  %v19 = vld [vmem:[%s0 + $0x4] sm:$0x3]
  %v20 = vld [vmem:[%s0 + $0x8] sm:$0x3]
  %v21 = vld [vmem:[%s0 + $0xc] sm:$0x3]
  %v22 = vld [vmem:[%s0 + $0x14] sm:$0x3]
  %v23 = vld [vmem:[%s0 + $0x18] sm:$0x3]
  %v24 = vld [vmem:[%s0 + $0x1c] sm:$0x3]
  %v25 = vld [vmem:[%s0 + $0x20] sm:$0x3]
  %v26 = vld [vmem:[%s1] sm:$0xf]
  %v27 = vld [vmem:[%s1 + $0x4] sm:$0xf]
  %v28 = vld [vmem:[%s1 + $0x8] sm:$0xf]
  %v29 = vld [vmem:[%s1 + $0xc] sm:$0xf]
  %v30 = vld [vmem:[%s1 + $0x10] sm:$0xf]
  %v31 = vld [vmem:[%s1 + $0x14] sm:$0xf]
  %v32 = vld [vmem:[%s1 + $0x18] sm:$0xf]
  %v33 = vld [vmem:[%s1 + $0x1c] sm:$0xf]
  %v34 = vld [vmem:[%s0] sm:$0x7]
  %v35 = vld [vmem:[%s0 + $0x4] sm:$0x7]
  %v36 = vld [vmem:[%s0 + $0x8] sm:$0x7]
  %v37 = vld [vmem:[%s0 + $0xc] sm:$0x7]
  %v38 = vld [vmem:[%s0 + $0x14] sm:$0x7]
  %v39 = vld [vmem:[%s0 + $0x18] sm:$0x7]
  %v40 = vld [vmem:[%s0 + $0x1c] sm:$0x7]
  %v41 = vld [vmem:[%s0 + $0x20] sm:$0x7]
  %v51 = vunpack.c.l.s4 1983009808
  %v52 = vunpack.c.0.s8 %v51
  %v53 = vlaneseq
  %v54 = vshrl.u32 %v53, 7
  %v55 = vsub.s32 %v52, %v54
  %v56 = vrot.slane %v34, %v55
  %v57 = vcombine.high %v56, %v56
  %v59 = vunpack.c.l.s4 1983009808
  %v60 = vunpack.c.0.s8 %v59
  %v61 = vlaneseq
  %v62 = vshrl.u32 %v61, 7
  %v63 = vsub.s32 %v60, %v62
  %v64 = vrot.slane %v35, %v63
  %v65 = vcombine.high %v64, %v64
  %v67 = vunpack.c.l.s4 1983009808
  %v68 = vunpack.c.0.s8 %v67
  %v69 = vlaneseq
  %v70 = vshrl.u32 %v69, 7
  %v71 = vsub.s32 %v68, %v70
  %v72 = vrot.slane %v36, %v71
  %v73 = vcombine.high %v72, %v72
  %v75 = vunpack.c.l.s4 1983009808
  %v76 = vunpack.c.0.s8 %v75
  %v77 = vlaneseq
  %v78 = vshrl.u32 %v77, 7
  %v79 = vsub.s32 %v76, %v78
  %v80 = vrot.slane %v37, %v79
  %v81 = vcombine.high %v80, %v80
  %v83 = vunpack.c.l.s4 1983009808
  %v84 = vunpack.c.0.s8 %v83
  %v85 = vlaneseq
  %v86 = vshrl.u32 %v85, 7
  %v87 = vsub.s32 %v84, %v86
  %v88 = vrot.slane %v38, %v87
  %v89 = vcombine.high %v88, %v88
  %v91 = vunpack.c.l.s4 1983009808
  %v92 = vunpack.c.0.s8 %v91
  %v93 = vlaneseq
  %v94 = vshrl.u32 %v93, 7
  %v95 = vsub.s32 %v92, %v94
  %v96 = vrot.slane %v39, %v95
  %v97 = vcombine.high %v96, %v96
  %v99 = vunpack.c.l.s4 1983009808
  %v100 = vunpack.c.0.s8 %v99
  %v101 = vlaneseq
  %v102 = vshrl.u32 %v101, 7
  %v103 = vsub.s32 %v100, %v102
  %v104 = vrot.slane %v40, %v103
  %v105 = vcombine.high %v104, %v104
  %v107 = vunpack.c.l.s4 1983009808
  %v108 = vunpack.c.0.s8 %v107
  %v109 = vlaneseq
  %v110 = vshrl.u32 %v109, 7
  %v111 = vsub.s32 %v108, %v110
  %v112 = vrot.slane %v41, %v111
  %v113 = vcombine.high %v112, %v112
  %vm114 = vsmask.f32 1280
  %vm115 = vsmask.f32 3336
  %vm116 = vmor %vm114, %vm115
  %vm117 = vsmask.f32 5392
  %vm118 = vmor %vm116, %vm117
  %vm119 = vsmask.f32 7448
  %vm120 = vmor %vm118, %vm119
  %v122 = vshrl.u32 %v56, 16
  %v124 = vrot.slane %v122, 6
  %v125 = vshll.u32 %v56, 16
  %v127 = vrot.slane %v125, 7
  %v128 = vor.u32 %v124, %v127
  %v129 = vrot.slane %v128, 2
  %v131 = vshll.u32 %v57, 16
  %v133 = vrot.slane %v131, 7
  %v134 = vsel %vm120, %v129, %v133
  %v136 = vshrl.u32 %v64, 16
  %v138 = vrot.slane %v136, 6
  %v139 = vshll.u32 %v64, 16
  %v141 = vrot.slane %v139, 7
  %v142 = vor.u32 %v138, %v141
  %v143 = vrot.slane %v142, 2
  %v145 = vshll.u32 %v65, 16
  %v147 = vrot.slane %v145, 7
  %v148 = vsel %vm120, %v143, %v147
  %v150 = vshrl.u32 %v72, 16
  %v152 = vrot.slane %v150, 6
  %v153 = vshll.u32 %v72, 16
  %v155 = vrot.slane %v153, 7
  %v156 = vor.u32 %v152, %v155
  %v157 = vrot.slane %v156, 2
  %v159 = vshll.u32 %v73, 16
  %v161 = vrot.slane %v159, 7
  %v162 = vsel %vm120, %v157, %v161
  %v164 = vshrl.u32 %v80, 16
  %v166 = vrot.slane %v164, 6
  %v167 = vshll.u32 %v80, 16
  %v169 = vrot.slane %v167, 7
  %v170 = vor.u32 %v166, %v169
  %v171 = vrot.slane %v170, 2
  %v173 = vshll.u32 %v81, 16
  %v175 = vrot.slane %v173, 7
  %v176 = vsel %vm120, %v171, %v175
  %v178 = vshrl.u32 %v88, 16
  %v180 = vrot.slane %v178, 6
  %v181 = vshll.u32 %v88, 16
  %v183 = vrot.slane %v181, 7
  %v184 = vor.u32 %v180, %v183
  %v185 = vrot.slane %v184, 2
  %v187 = vshll.u32 %v89, 16
  %v189 = vrot.slane %v187, 7
  %v190 = vsel %vm120, %v185, %v189
  %v192 = vshrl.u32 %v96, 16
  %v194 = vrot.slane %v192, 6
  %v195 = vshll.u32 %v96, 16
  %v197 = vrot.slane %v195, 7
  %v198 = vor.u32 %v194, %v197
  %v199 = vrot.slane %v198, 2
  %v201 = vshll.u32 %v97, 16
  %v203 = vrot.slane %v201, 7
  %v204 = vsel %vm120, %v199, %v203
  %v206 = vshrl.u32 %v104, 16
  %v208 = vrot.slane %v206, 6
  %v209 = vshll.u32 %v104, 16
  %v211 = vrot.slane %v209, 7
  %v212 = vor.u32 %v208, %v211
  %v213 = vrot.slane %v212, 2
  %v215 = vshll.u32 %v105, 16
  %v217 = vrot.slane %v215, 7
  %v218 = vsel %vm120, %v213, %v217
  %v220 = vshrl.u32 %v112, 16
  %v222 = vrot.slane %v220, 6
  %v223 = vshll.u32 %v112, 16
  %v225 = vrot.slane %v223, 7
  %v226 = vor.u32 %v222, %v225
  %v227 = vrot.slane %v226, 2
  %v229 = vshll.u32 %v113, 16
  %v231 = vrot.slane %v229, 7
  %v232 = vsel %vm120, %v227, %v231
  %s233 = scalar_lea.vmem %s1, 32
  %v234 = vld [vmem:[%s233] sm:$0xf]
  %v235 = vld [vmem:[%s233 + $0x4] sm:$0xf]
  %v236 = vld [vmem:[%s233 + $0x8] sm:$0xf]
  %v237 = vld [vmem:[%s233 + $0xc] sm:$0xf]
  %v238 = vld [vmem:[%s233 + $0x10] sm:$0xf]
  %v239 = vld [vmem:[%s233 + $0x14] sm:$0xf]
  %v240 = vld [vmem:[%s233 + $0x18] sm:$0xf]
  %v241 = vld [vmem:[%s233 + $0x1c] sm:$0xf]
  %v242 = vcombine.low %v134, %v148
  %v243 = vcombine.low %v162, %v176
  %v245 = vunpack.c.l.s4 1983009808
  %v246 = vunpack.c.0.s8 %v245
  %v247 = vlaneseq
  %v248 = vshrl.u32 %v247, 7
  %v249 = vsub.s32 %v246, %v248
  %v250 = vrot.slane %v242, %v249
  %v252 = vunpack.c.l.s4 1983009808
  %v253 = vunpack.c.0.s8 %v252
  %v254 = vlaneseq
  %v255 = vshrl.u32 %v254, 7
  %v256 = vsub.s32 %v253, %v255
  %v257 = vrot.slane %v243, %v256
  %v258 = vcombine.low %v250, %v257
  %v259 = vcombine.low %v190, %v204
  %v260 = vcombine.low %v218, %v232
  %v262 = vunpack.c.l.s4 1983009808
  %v263 = vunpack.c.0.s8 %v262
  %v264 = vlaneseq
  %v265 = vshrl.u32 %v264, 7
  %v266 = vsub.s32 %v263, %v265
  %v267 = vrot.slane %v259, %v266
  %v269 = vunpack.c.l.s4 1983009808
  %v270 = vunpack.c.0.s8 %v269
  %v271 = vlaneseq
  %v272 = vshrl.u32 %v271, 7
  %v273 = vsub.s32 %v270, %v272
  %v274 = vrot.slane %v260, %v273
  %v275 = vcombine.low %v267, %v274
  %v284 = vunpack.c.l.b16 %v234
  %v285 = vunpack.c.l.b16 %v235
  %v286 = vunpack.c.l.b16 %v236
  %v287 = vunpack.c.l.b16 %v237
  %v288 = vunpack.c.l.b16 %v238
  %v289 = vunpack.c.l.b16 %v239
  %v290 = vunpack.c.l.b16 %v240
  %v291 = vunpack.c.l.b16 %v241
  %v292 = vpack.c.b16 %v285, %v284
  %v293 = vpack.c.b16 %v287, %v286
  %v294 = vpack.c.b16 %v289, %v288
  %v295 = vpack.c.b16 %v291, %v290
  %vm300 = vcmask 523264
  %v302 = vsel %vm300, %v258, 0
  %v305 = vsel %vm300, %v275, 0
  %307 = vmatprep.subr.bf16.mxu0 0
  %308 = vmatpush1.bf16.msra.mxu0 0
  %309 = vmatprep.subr.bf16.mxu0 0
  %310 = vmatpush1.bf16.msra.mxu0 0
  %311 = vmatprep.subr.bf16.mxu0 0
  %312 = vmatpush1.bf16.msra.mxu0 0
  %313 = vmatprep.subr.bf16.mxu0 0
  %314 = vmatpush1.bf16.msra.mxu0 0
  %315 = vmatprep.subr.bf16.mxu0 0
  %316 = vmatpush1.bf16.msra.mxu0 %v295
  %317 = vmatprep.subr.bf16.mxu0 0
  %318 = vmatpush1.bf16.msra.mxu0 %v294
  %319 = vmatprep.subr.bf16.mxu0 0
  %320 = vmatpush1.bf16.msra.mxu0 %v293
  %321 = vmatprep.subr.bf16.mxu0 0
  %322 = vmatpush1.bf16.msra.mxu0 %v292
  %323 = vmatprep.subr.bf16.mxu0 0
  %324 = vmatpush2.bf16.msra.mxu0 0
  %325 = vmatprep.subr.bf16.mxu0 0
  %326 = vmatpush2.bf16.msra.mxu0 0
  %327 = vmatprep.subr.bf16.mxu0 0
  %328 = vmatpush2.bf16.msra.mxu0 0
  %329 = vmatprep.subr.bf16.mxu0 0
  %330 = vmatpush2.bf16.msra.mxu0 0
  %331 = vmatprep.subr.bf16.mxu0 0
  %332 = vmatpush2.bf16.msra.mxu0 0
  %333 = vmatprep.subr.bf16.mxu0 0
  %334 = vmatpush2.bf16.msra.mxu0 0
  %335 = vmatprep.subr.bf16.mxu0 0
  %336 = vmatpush2.bf16.msra.mxu0 0
  %337 = vmatprep.subr.bf16.mxu0 0
  %338 = vmatpush2.bf16.msra.mxu0 0
  %339 = vmatprep.mubr.bf16.mxu0 0
  %340 = vmatmul.mubr.bf16.gmra.mxu0 %v302
  %v341 = vpop.f32.mrf.mxu0
  %v342 = vadd.f32 0.0, %v341
  %v343 = vpop.f32.mrf.mxu0
  %v344 = vpop.f32.mrf.mxu0
  %v345 = vadd.f32 0.0, %v344
  %v346 = vpop.f32.mrf.mxu0
  %347 = vmatprep.mubr.bf16.mxu0 0
  %348 = vmatmul.mubr.bf16.gmra.mxu0 %v305
  %v349 = vpop.f32.mrf.mxu0
  %v350 = vadd.f32 0.0, %v349
  %v351 = vpop.f32.mrf.mxu0
  %v352 = vpop.f32.mrf.mxu0
  %v353 = vadd.f32 0.0, %v352
  %v354 = vpop.f32.mrf.mxu0
  %355 = vdwg.mxu0
  %v364 = vcombine.low %v18, %v19
  %v365 = vcombine.low %v20, %v21
  %v367 = vunpack.c.l.s4 1983009808
  %v368 = vunpack.c.0.s8 %v367
  %v369 = vlaneseq
  %v370 = vshrl.u32 %v369, 7
  %v371 = vsub.s32 %v368, %v370
  %v372 = vrot.slane %v364, %v371
  %v374 = vunpack.c.l.s4 1983009808
  %v375 = vunpack.c.0.s8 %v374
  %v376 = vlaneseq
  %v377 = vshrl.u32 %v376, 7
  %v378 = vsub.s32 %v375, %v377
  %v379 = vrot.slane %v365, %v378
  %v380 = vcombine.low %v372, %v379
  %v381 = vcombine.low %v22, %v23
  %v382 = vcombine.low %v24, %v25
  %v384 = vunpack.c.l.s4 1983009808
  %v385 = vunpack.c.0.s8 %v384
  %v386 = vlaneseq
  %v387 = vshrl.u32 %v386, 7
  %v388 = vsub.s32 %v385, %v387
  %v389 = vrot.slane %v381, %v388
  %v391 = vunpack.c.l.s4 1983009808
  %v392 = vunpack.c.0.s8 %v391
  %v393 = vlaneseq
  %v394 = vshrl.u32 %v393, 7
  %v395 = vsub.s32 %v392, %v394
  %v396 = vrot.slane %v382, %v395
  %v397 = vcombine.low %v389, %v396
  %v406 = vunpack.c.l.b16 %v26
  %v407 = vunpack.c.l.b16 %v27
  %v408 = vunpack.c.l.b16 %v28
  %v409 = vunpack.c.l.b16 %v29
  %v410 = vunpack.c.l.b16 %v30
  %v411 = vunpack.c.l.b16 %v31
  %v412 = vunpack.c.l.b16 %v32
  %v413 = vunpack.c.l.b16 %v33
  %v414 = vpack.c.b16 %v407, %v406
  %v415 = vpack.c.b16 %v409, %v408
  %v416 = vpack.c.b16 %v411, %v410
  %v417 = vpack.c.b16 %v413, %v412
  %v423 = vsel %vm300, %v380, 0
  %v426 = vsel %vm300, %v397, 0
  %428 = vmatprep.subr.bf16.mxu0 0
  %429 = vmatpush1.bf16.msra.mxu0 0
  %430 = vmatprep.subr.bf16.mxu0 0
  %431 = vmatpush1.bf16.msra.mxu0 0
  %432 = vmatprep.subr.bf16.mxu0 0
  %433 = vmatpush1.bf16.msra.mxu0 0
  %434 = vmatprep.subr.bf16.mxu0 0
  %435 = vmatpush1.bf16.msra.mxu0 0
  %436 = vmatprep.subr.bf16.mxu0 0
  %437 = vmatpush1.bf16.msra.mxu0 %v417
  %438 = vmatprep.subr.bf16.mxu0 0
  %439 = vmatpush1.bf16.msra.mxu0 %v416
  %440 = vmatprep.subr.bf16.mxu0 0
  %441 = vmatpush1.bf16.msra.mxu0 %v415
  %442 = vmatprep.subr.bf16.mxu0 0
  %443 = vmatpush1.bf16.msra.mxu0 %v414
  %444 = vmatprep.subr.bf16.mxu0 0
  %445 = vmatpush2.bf16.msra.mxu0 0
  %446 = vmatprep.subr.bf16.mxu0 0
  %447 = vmatpush2.bf16.msra.mxu0 0
  %448 = vmatprep.subr.bf16.mxu0 0
  %449 = vmatpush2.bf16.msra.mxu0 0
  %450 = vmatprep.subr.bf16.mxu0 0
  %451 = vmatpush2.bf16.msra.mxu0 0
  %452 = vmatprep.subr.bf16.mxu0 0
  %453 = vmatpush2.bf16.msra.mxu0 0
  %454 = vmatprep.subr.bf16.mxu0 0
  %455 = vmatpush2.bf16.msra.mxu0 0
  %456 = vmatprep.subr.bf16.mxu0 0
  %457 = vmatpush2.bf16.msra.mxu0 0
  %458 = vmatprep.subr.bf16.mxu0 0
  %459 = vmatpush2.bf16.msra.mxu0 0
  %460 = vmatprep.mubr.bf16.mxu0 0
  %461 = vmatmul.mubr.bf16.gmra.mxu0 %v423
  %v462 = vpop.f32.mrf.mxu0
  %v463 = vadd.f32 %v342, %v462
  %v464 = vpop.f32.mrf.mxu0
  %v465 = vpop.f32.mrf.mxu0
  %v466 = vadd.f32 %v345, %v465
  %v467 = vpop.f32.mrf.mxu0
  %468 = vmatprep.mubr.bf16.mxu0 0
  %469 = vmatmul.mubr.bf16.gmra.mxu0 %v426
  %v470 = vpop.f32.mrf.mxu0
  %v471 = vadd.f32 %v350, %v470
  %v472 = vpop.f32.mrf.mxu0
  %v473 = vpop.f32.mrf.mxu0
  %v474 = vadd.f32 %v353, %v473
  %v475 = vpop.f32.mrf.mxu0
  %476 = vdwg.mxu0
  %s477 = scalar_lea.vmem %s0, 4
  %v478 = vld [vmem:[%s477] sm:$0x3]
  %v479 = vld [vmem:[%s477 + $0x4] sm:$0x3]
  %v480 = vld [vmem:[%s477 + $0x8] sm:$0x3]
  %v481 = vld [vmem:[%s477 + $0xc] sm:$0x3]
  %v482 = vld [vmem:[%s477 + $0x14] sm:$0x3]
  %v483 = vld [vmem:[%s477 + $0x18] sm:$0x3]
  %v484 = vld [vmem:[%s477 + $0x1c] sm:$0x3]
  %v485 = vld [vmem:[%s477 + $0x20] sm:$0x3]
  %s486 = scalar_lea.vmem %s1, 64
  %v487 = vld [vmem:[%s486] sm:$0xf]
  %v488 = vld [vmem:[%s486 + $0x4] sm:$0xf]
  %v489 = vld [vmem:[%s486 + $0x8] sm:$0xf]
  %v490 = vld [vmem:[%s486 + $0xc] sm:$0xf]
  %v491 = vld [vmem:[%s486 + $0x10] sm:$0xf]
  %v492 = vld [vmem:[%s486 + $0x14] sm:$0xf]
  %v493 = vld [vmem:[%s486 + $0x18] sm:$0xf]
  %v494 = vld [vmem:[%s486 + $0x1c] sm:$0xf]
  %v503 = vcombine.low %v478, %v479
  %v504 = vcombine.low %v480, %v481
  %v506 = vunpack.c.l.s4 1983009808
  %v507 = vunpack.c.0.s8 %v506
  %v508 = vlaneseq
  %v509 = vshrl.u32 %v508, 7
  %v510 = vsub.s32 %v507, %v509
  %v511 = vrot.slane %v503, %v510
  %v513 = vunpack.c.l.s4 1983009808
  %v514 = vunpack.c.0.s8 %v513
  %v515 = vlaneseq
  %v516 = vshrl.u32 %v515, 7
  %v517 = vsub.s32 %v514, %v516
  %v518 = vrot.slane %v504, %v517
  %v519 = vcombine.low %v511, %v518
  %v520 = vcombine.low %v482, %v483
  %v521 = vcombine.low %v484, %v485
  %v523 = vunpack.c.l.s4 1983009808
  %v524 = vunpack.c.0.s8 %v523
  %v525 = vlaneseq
  %v526 = vshrl.u32 %v525, 7
  %v527 = vsub.s32 %v524, %v526
  %v528 = vrot.slane %v520, %v527
  %v530 = vunpack.c.l.s4 1983009808
  %v531 = vunpack.c.0.s8 %v530
  %v532 = vlaneseq
  %v533 = vshrl.u32 %v532, 7
  %v534 = vsub.s32 %v531, %v533
  %v535 = vrot.slane %v521, %v534
  %v536 = vcombine.low %v528, %v535
  %v545 = vunpack.c.l.b16 %v487
  %v546 = vunpack.c.l.b16 %v488
  %v547 = vunpack.c.l.b16 %v489
  %v548 = vunpack.c.l.b16 %v490
  %v549 = vunpack.c.l.b16 %v491
  %v550 = vunpack.c.l.b16 %v492
  %v551 = vunpack.c.l.b16 %v493
  %v552 = vunpack.c.l.b16 %v494
  %v553 = vpack.c.b16 %v546, %v545
  %v554 = vpack.c.b16 %v548, %v547
  %v555 = vpack.c.b16 %v550, %v549
  %v556 = vpack.c.b16 %v552, %v551
  %v562 = vsel %vm300, %v519, 0
  %v565 = vsel %vm300, %v536, 0
  %567 = vmatprep.subr.bf16.mxu0 0
  %568 = vmatpush1.bf16.msra.mxu0 0
  %569 = vmatprep.subr.bf16.mxu0 0
  %570 = vmatpush1.bf16.msra.mxu0 0
  %571 = vmatprep.subr.bf16.mxu0 0
  %572 = vmatpush1.bf16.msra.mxu0 0
  %573 = vmatprep.subr.bf16.mxu0 0
  %574 = vmatpush1.bf16.msra.mxu0 0
  %575 = vmatprep.subr.bf16.mxu0 0
  %576 = vmatpush1.bf16.msra.mxu0 %v556
  %577 = vmatprep.subr.bf16.mxu0 0
  %578 = vmatpush1.bf16.msra.mxu0 %v555
  %579 = vmatprep.subr.bf16.mxu0 0
  %580 = vmatpush1.bf16.msra.mxu0 %v554
  %581 = vmatprep.subr.bf16.mxu0 0
  %582 = vmatpush1.bf16.msra.mxu0 %v553
  %583 = vmatprep.subr.bf16.mxu0 0
  %584 = vmatpush2.bf16.msra.mxu0 0
  %585 = vmatprep.subr.bf16.mxu0 0
  %586 = vmatpush2.bf16.msra.mxu0 0
  %587 = vmatprep.subr.bf16.mxu0 0
  %588 = vmatpush2.bf16.msra.mxu0 0
  %589 = vmatprep.subr.bf16.mxu0 0
  %590 = vmatpush2.bf16.msra.mxu0 0
  %591 = vmatprep.subr.bf16.mxu0 0
  %592 = vmatpush2.bf16.msra.mxu0 0
  %593 = vmatprep.subr.bf16.mxu0 0
  %594 = vmatpush2.bf16.msra.mxu0 0
  %595 = vmatprep.subr.bf16.mxu0 0
  %596 = vmatpush2.bf16.msra.mxu0 0
  %597 = vmatprep.subr.bf16.mxu0 0
  %598 = vmatpush2.bf16.msra.mxu0 0
  %599 = vmatprep.mubr.bf16.mxu0 0
  %600 = vmatmul.mubr.bf16.gmra.mxu0 %v562
  %v601 = vpop.f32.mrf.mxu0
  %v602 = vadd.f32 0.0, %v601
  %v603 = vpop.f32.mrf.mxu0
  %v604 = vpop.f32.mrf.mxu0
  %v605 = vadd.f32 0.0, %v604
  %v606 = vpop.f32.mrf.mxu0
  %607 = vmatprep.mubr.bf16.mxu0 0
  %608 = vmatmul.mubr.bf16.gmra.mxu0 %v565
  %v609 = vpop.f32.mrf.mxu0
  %v610 = vadd.f32 0.0, %v609
  %v611 = vpop.f32.mrf.mxu0
  %v612 = vpop.f32.mrf.mxu0
  %v613 = vadd.f32 0.0, %v612
  %v614 = vpop.f32.mrf.mxu0
  %615 = vdwg.mxu0
  %v616 = vadd.f32 %v463, %v602
  %v617 = vadd.f32 %v466, %v605
  %v618 = vadd.f32 %v471, %v610
  %v619 = vadd.f32 %v474, %v613
  %v620 = vld [vmem:[%s477] sm:$0x7]
  %v621 = vld [vmem:[%s477 + $0x4] sm:$0x7]
  %v622 = vld [vmem:[%s477 + $0x8] sm:$0x7]
  %v623 = vld [vmem:[%s477 + $0xc] sm:$0x7]
  %v624 = vld [vmem:[%s477 + $0x14] sm:$0x7]
  %v625 = vld [vmem:[%s477 + $0x18] sm:$0x7]
  %v626 = vld [vmem:[%s477 + $0x1c] sm:$0x7]
  %v627 = vld [vmem:[%s477 + $0x20] sm:$0x7]
  %v637 = vunpack.c.l.s4 1983009808
  %v638 = vunpack.c.0.s8 %v637
  %v639 = vlaneseq
  %v640 = vshrl.u32 %v639, 7
  %v641 = vsub.s32 %v638, %v640
  %v642 = vrot.slane %v620, %v641
  %v643 = vcombine.high %v642, %v642
  %v645 = vunpack.c.l.s4 1983009808
  %v646 = vunpack.c.0.s8 %v645
  %v647 = vlaneseq
  %v648 = vshrl.u32 %v647, 7
  %v649 = vsub.s32 %v646, %v648
  %v650 = vrot.slane %v621, %v649
  %v651 = vcombine.high %v650, %v650
  %v653 = vunpack.c.l.s4 1983009808
  %v654 = vunpack.c.0.s8 %v653
  %v655 = vlaneseq
  %v656 = vshrl.u32 %v655, 7
  %v657 = vsub.s32 %v654, %v656
  %v658 = vrot.slane %v622, %v657
  %v659 = vcombine.high %v658, %v658
  %v661 = vunpack.c.l.s4 1983009808
  %v662 = vunpack.c.0.s8 %v661
  %v663 = vlaneseq
  %v664 = vshrl.u32 %v663, 7
  %v665 = vsub.s32 %v662, %v664
  %v666 = vrot.slane %v623, %v665
  %v667 = vcombine.high %v666, %v666
  %v669 = vunpack.c.l.s4 1983009808
  %v670 = vunpack.c.0.s8 %v669
  %v671 = vlaneseq
  %v672 = vshrl.u32 %v671, 7
  %v673 = vsub.s32 %v670, %v672
  %v674 = vrot.slane %v624, %v673
  %v675 = vcombine.high %v674, %v674
  %v677 = vunpack.c.l.s4 1983009808
  %v678 = vunpack.c.0.s8 %v677
  %v679 = vlaneseq
  %v680 = vshrl.u32 %v679, 7
  %v681 = vsub.s32 %v678, %v680
  %v682 = vrot.slane %v625, %v681
  %v683 = vcombine.high %v682, %v682
  %v685 = vunpack.c.l.s4 1983009808
  %v686 = vunpack.c.0.s8 %v685
  %v687 = vlaneseq
  %v688 = vshrl.u32 %v687, 7
  %v689 = vsub.s32 %v686, %v688
  %v690 = vrot.slane %v626, %v689
  %v691 = vcombine.high %v690, %v690
  %v693 = vunpack.c.l.s4 1983009808
  %v694 = vunpack.c.0.s8 %v693
  %v695 = vlaneseq
  %v696 = vshrl.u32 %v695, 7
  %v697 = vsub.s32 %v694, %v696
  %v698 = vrot.slane %v627, %v697
  %v699 = vcombine.high %v698, %v698
  %v701 = vshrl.u32 %v642, 16
  %v703 = vrot.slane %v701, 6
  %v704 = vshll.u32 %v642, 16
  %v706 = vrot.slane %v704, 7
  %v707 = vor.u32 %v703, %v706
  %v708 = vrot.slane %v707, 2
  %v710 = vshll.u32 %v643, 16
  %v712 = vrot.slane %v710, 7
  %v713 = vsel %vm120, %v708, %v712
  %v715 = vshrl.u32 %v650, 16
  %v717 = vrot.slane %v715, 6
  %v718 = vshll.u32 %v650, 16
  %v720 = vrot.slane %v718, 7
  %v721 = vor.u32 %v717, %v720
  %v722 = vrot.slane %v721, 2
  %v724 = vshll.u32 %v651, 16
  %v726 = vrot.slane %v724, 7
  %v727 = vsel %vm120, %v722, %v726
  %v729 = vshrl.u32 %v658, 16
  %v731 = vrot.slane %v729, 6
  %v732 = vshll.u32 %v658, 16
  %v734 = vrot.slane %v732, 7
  %v735 = vor.u32 %v731, %v734
  %v736 = vrot.slane %v735, 2
  %v738 = vshll.u32 %v659, 16
  %v740 = vrot.slane %v738, 7
  %v741 = vsel %vm120, %v736, %v740
  %v743 = vshrl.u32 %v666, 16
  %v745 = vrot.slane %v743, 6
  %v746 = vshll.u32 %v666, 16
  %v748 = vrot.slane %v746, 7
  %v749 = vor.u32 %v745, %v748
  %v750 = vrot.slane %v749, 2
  %v752 = vshll.u32 %v667, 16
  %v754 = vrot.slane %v752, 7
  %v755 = vsel %vm120, %v750, %v754
  %v757 = vshrl.u32 %v674, 16
  %v759 = vrot.slane %v757, 6
  %v760 = vshll.u32 %v674, 16
  %v762 = vrot.slane %v760, 7
  %v763 = vor.u32 %v759, %v762
  %v764 = vrot.slane %v763, 2
  %v766 = vshll.u32 %v675, 16
  %v768 = vrot.slane %v766, 7
  %v769 = vsel %vm120, %v764, %v768
  %v771 = vshrl.u32 %v682, 16
  %v773 = vrot.slane %v771, 6
  %v774 = vshll.u32 %v682, 16
  %v776 = vrot.slane %v774, 7
  %v777 = vor.u32 %v773, %v776
  %v778 = vrot.slane %v777, 2
  %v780 = vshll.u32 %v683, 16
  %v782 = vrot.slane %v780, 7
  %v783 = vsel %vm120, %v778, %v782
  %v785 = vshrl.u32 %v690, 16
  %v787 = vrot.slane %v785, 6
  %v788 = vshll.u32 %v690, 16
  %v790 = vrot.slane %v788, 7
  %v791 = vor.u32 %v787, %v790
  %v792 = vrot.slane %v791, 2
  %v794 = vshll.u32 %v691, 16
  %v796 = vrot.slane %v794, 7
  %v797 = vsel %vm120, %v792, %v796
  %v799 = vshrl.u32 %v698, 16
  %v801 = vrot.slane %v799, 6
  %v802 = vshll.u32 %v698, 16
  %v804 = vrot.slane %v802, 7
  %v805 = vor.u32 %v801, %v804
  %v806 = vrot.slane %v805, 2
  %v808 = vshll.u32 %v699, 16
  %v810 = vrot.slane %v808, 7
  %v811 = vsel %vm120, %v806, %v810
  %s812 = scalar_lea.vmem %s1, 96
  %v813 = vld [vmem:[%s812] sm:$0xf]
  %v814 = vld [vmem:[%s812 + $0x4] sm:$0xf]
  %v815 = vld [vmem:[%s812 + $0x8] sm:$0xf]
  %v816 = vld [vmem:[%s812 + $0xc] sm:$0xf]
  %v817 = vld [vmem:[%s812 + $0x10] sm:$0xf]
  %v818 = vld [vmem:[%s812 + $0x14] sm:$0xf]
  %v819 = vld [vmem:[%s812 + $0x18] sm:$0xf]
  %v820 = vld [vmem:[%s812 + $0x1c] sm:$0xf]
  %v821 = vcombine.low %v713, %v727
  %v822 = vcombine.low %v741, %v755
  %v824 = vunpack.c.l.s4 1983009808
  %v825 = vunpack.c.0.s8 %v824
  %v826 = vlaneseq
  %v827 = vshrl.u32 %v826, 7
  %v828 = vsub.s32 %v825, %v827
  %v829 = vrot.slane %v821, %v828
  %v831 = vunpack.c.l.s4 1983009808
  %v832 = vunpack.c.0.s8 %v831
  %v833 = vlaneseq
  %v834 = vshrl.u32 %v833, 7
  %v835 = vsub.s32 %v832, %v834
  %v836 = vrot.slane %v822, %v835
  %v837 = vcombine.low %v829, %v836
  %v838 = vcombine.low %v769, %v783
  %v839 = vcombine.low %v797, %v811
  %v841 = vunpack.c.l.s4 1983009808
  %v842 = vunpack.c.0.s8 %v841
  %v843 = vlaneseq
  %v844 = vshrl.u32 %v843, 7
  %v845 = vsub.s32 %v842, %v844
  %v846 = vrot.slane %v838, %v845
  %v848 = vunpack.c.l.s4 1983009808
  %v849 = vunpack.c.0.s8 %v848
  %v850 = vlaneseq
  %v851 = vshrl.u32 %v850, 7
  %v852 = vsub.s32 %v849, %v851
  %v853 = vrot.slane %v839, %v852
  %v854 = vcombine.low %v846, %v853
  %v863 = vunpack.c.l.b16 %v813
  %v864 = vunpack.c.l.b16 %v814
  %v865 = vunpack.c.l.b16 %v815
  %v866 = vunpack.c.l.b16 %v816
  %v867 = vunpack.c.l.b16 %v817
  %v868 = vunpack.c.l.b16 %v818
  %v869 = vunpack.c.l.b16 %v819
  %v870 = vunpack.c.l.b16 %v820
  %v871 = vpack.c.b16 %v864, %v863
  %v872 = vpack.c.b16 %v866, %v865
  %v873 = vpack.c.b16 %v868, %v867
  %v874 = vpack.c.b16 %v870, %v869
  %v880 = vsel %vm300, %v837, 0
  %v883 = vsel %vm300, %v854, 0
  %885 = vmatprep.subr.bf16.mxu0 0
  %886 = vmatpush1.bf16.msra.mxu0 0
  %887 = vmatprep.subr.bf16.mxu0 0
  %888 = vmatpush1.bf16.msra.mxu0 0
  %889 = vmatprep.subr.bf16.mxu0 0
  %890 = vmatpush1.bf16.msra.mxu0 0
  %891 = vmatprep.subr.bf16.mxu0 0
  %892 = vmatpush1.bf16.msra.mxu0 0
  %893 = vmatprep.subr.bf16.mxu0 0
  %894 = vmatpush1.bf16.msra.mxu0 %v874
  %895 = vmatprep.subr.bf16.mxu0 0
  %896 = vmatpush1.bf16.msra.mxu0 %v873
  %897 = vmatprep.subr.bf16.mxu0 0
  %898 = vmatpush1.bf16.msra.mxu0 %v872
  %899 = vmatprep.subr.bf16.mxu0 0
  %900 = vmatpush1.bf16.msra.mxu0 %v871
  %901 = vmatprep.subr.bf16.mxu0 0
  %902 = vmatpush2.bf16.msra.mxu0 0
  %903 = vmatprep.subr.bf16.mxu0 0
  %904 = vmatpush2.bf16.msra.mxu0 0
  %905 = vmatprep.subr.bf16.mxu0 0
  %906 = vmatpush2.bf16.msra.mxu0 0
  %907 = vmatprep.subr.bf16.mxu0 0
  %908 = vmatpush2.bf16.msra.mxu0 0
  %909 = vmatprep.subr.bf16.mxu0 0
  %910 = vmatpush2.bf16.msra.mxu0 0
  %911 = vmatprep.subr.bf16.mxu0 0
  %912 = vmatpush2.bf16.msra.mxu0 0
  %913 = vmatprep.subr.bf16.mxu0 0
  %914 = vmatpush2.bf16.msra.mxu0 0
  %915 = vmatprep.subr.bf16.mxu0 0
  %916 = vmatpush2.bf16.msra.mxu0 0
  %917 = vmatprep.mubr.bf16.mxu0 0
  %918 = vmatmul.mubr.bf16.gmra.mxu0 %v880
  %v919 = vpop.f32.mrf.mxu0
  %v920 = vadd.f32 0.0, %v919
  %v921 = vpop.f32.mrf.mxu0
  %v922 = vpop.f32.mrf.mxu0
  %v923 = vadd.f32 0.0, %v922
  %v924 = vpop.f32.mrf.mxu0
  %925 = vmatprep.mubr.bf16.mxu0 0
  %926 = vmatmul.mubr.bf16.gmra.mxu0 %v883
  %v927 = vpop.f32.mrf.mxu0
  %v928 = vadd.f32 0.0, %v927
  %v929 = vpop.f32.mrf.mxu0
  %v930 = vpop.f32.mrf.mxu0
  %v931 = vadd.f32 0.0, %v930
  %v932 = vpop.f32.mrf.mxu0
  %933 = vdwg.mxu0
  %v934 = vadd.f32 %v616, %v920
  %v935 = vadd.f32 %v617, %v923
  %v936 = vadd.f32 %v618, %v928
  %v937 = vadd.f32 %v619, %v931
  %v938 = vld [vmem:[%s2] sm:$0x1]
  %v940 = vlaneseq
  %v941 = vshrl.u32 %v940, 7
  %v942 = vsub.s32 0, %v941
  %v943 = vrot.slane %v938, %v942
  %v945 = vadd.f32 %v934, %v943
  %v946 = vadd.f32 %v935, %v943
  %v947 = vadd.f32 %v936, %v943
  %v948 = vadd.f32 %v937, %v943
  %vm949 = vcmp.gt.f32.partialorder %v945, 0.0
  %vm950 = vcmp.gt.f32.partialorder %v946, 0.0
  %vm951 = vcmp.gt.f32.partialorder %v947, 0.0
  %vm952 = vcmp.gt.f32.partialorder %v948, 0.0
  %v953 = vmul.f32 %v945, 0.01
  %v954 = vmul.f32 %v946, 0.01
  %v955 = vmul.f32 %v947, 0.01
  %v956 = vmul.f32 %v948, 0.01
  %v957 = vsel %vm949, %v945, %v953
  %v958 = vsel %vm950, %v946, %v954
  %v959 = vsel %vm951, %v947, %v955
  %v960 = vsel %vm952, %v948, %v956
  %v961 = vld [vmem:[%s3] sm:$0xff]
  %v962 = vld [vmem:[%s3 + $0x8] sm:$0xff]
  %v963 = vmul.f32 %v957, %v961
  %v964 = vmul.f32 %v958, %v962
  %v965 = vmul.f32 %v959, %v961
  %v966 = vmul.f32 %v960, %v962
  %vm967 = vcmask 261120
  %v968 = vsel %vm967, %v963, 0.0
  %969 = vadd.xlane.f32.xlu0 %v968
  %v970 = vpop.xlane.xlu0 %969
  %v971 = vsel %vm967, %v964, 0.0
  %972 = vadd.xlane.f32.xlu0 %v971
  %v973 = vpop.xlane.xlu0 %972
  %v974 = vsel %vm967, %v965, 0.0
  %975 = vadd.xlane.f32.xlu0 %v974
  %v976 = vpop.xlane.xlu0 %975
  %v977 = vsel %vm967, %v966, 0.0
  %978 = vadd.xlane.f32.xlu0 %v977
  %v979 = vpop.xlane.xlu0 %978
  %v984 = vlaneseq
  %v985 = vand.u32 %v984, 127
  %v986 = vlaneseq
  %v987 = vshrl.u32 %v986, 7
  %v988 = vsub.s32 %v985, %v987
  %v989 = vrot.slane %v970, %v988
  %v990 = vadd.s32 %v985, 4294967288
  %v991 = vlaneseq
  %v992 = vshrl.u32 %v991, 7
  %v993 = vsub.s32 %v990, %v992
  %v994 = vrot.slane %v973, %v993
  %vm995 = vcmask 130112
  %v996 = vsel %vm995, %v994, %v989
  %v997 = vlaneseq
  %v998 = vshrl.u32 %v997, 7
  %v999 = vsub.s32 %v985, %v998
  %v1000 = vrot.slane %v976, %v999
  %v1001 = vlaneseq
  %v1002 = vshrl.u32 %v1001, 7
  %v1003 = vsub.s32 %v990, %v1002
  %v1004 = vrot.slane %v979, %v1003
  %v1005 = vsel %vm995, %v1004, %v1000
  %vm1006 = vcmask 1041409
  %v1007 = vsel %vm1006, %v1005, %v996
  %vm1009 = vcmask 123904
  %v1010 = vsel %vm1009, %v1007, 0.0
  %1011 = vadd.xlane.f32.xlu0 %v1010
  %v1012 = vpop.xlane.xlu0 %1011
  %vm1013 = vcmask 1024
  %1014 = vst.msk [vmem:[%s4] sm:$0x3] %vm1013, %v1012
  // Predicated region
  $region18: #{discriminator_wgan_forward.5} parent=0 // pred_check
    _
  $region19: #{discriminator_wgan_forward.5} parent=0 // pred_check_branch
    %1016 = sbr.rel (0) target = $region21
  $region20: #{discriminator_wgan_forward.5} parent=0 // pred_region
    _
  $region21: #{discriminator_wgan_forward.5} parent=0 // pred_fallthru
    _
  // Predicated region
  $region22: #{discriminator_wgan_forward.5} parent=0 // pred_check
    _
  $region23: #{discriminator_wgan_forward.5} parent=0 // pred_check_branch
    %1018 = sbr.rel (0) target = $region25
  $region24: #{discriminator_wgan_forward.5} parent=0 // pred_region
    _
  $region25: #{discriminator_wgan_forward.5} parent=0 // pred_fallthru
    _

</llo_original>
